<compile_context>
chip_gen: v7x
topology: tpu7x:2x2x1
jax: 0.10.0
libtpu: 0.0.40
codegen_flags: <defaults>
</compile_context>

<pallas_src>
import jax
import jax.numpy as jnp
from jax.experimental import pallas as pl
from jax.experimental.pallas import tpu as pltpu


# ----------------------------------------------------------------------------
# Kernel factory: static trip counts / padded batch baked in via closure.
# ----------------------------------------------------------------------------
def _make_encdec_kernel(T_in, T_out, Bp):
    def kernel(
        tf_ref,    # [T_out]          int32 teacher-forcing flags (SMEM)
        x_ref,     # [T_in * Bp, I]   encoder input, time-major, flattened (VMEM)
        tgt_ref,   # [T_out * Bp, I]  teacher targets, time-major, flattened (VMEM)
        wie_ref,   # [I, 4H]  encoder W_ih^T   (g-gate cols pre-scaled x2)
        whe_ref,   # [H, 4H]  encoder W_hh^T   (g-gate cols pre-scaled x2)
        be_ref,    # [1, 4H]  encoder bias     (g-gate cols pre-scaled x2)
        wid_ref,   # [I, 4H]  decoder W_ih^T   (g-gate cols pre-scaled x2)
        whd_ref,   # [H, 4H]  decoder W_hh^T   (g-gate cols pre-scaled x2)
        bd_ref,    # [1, 4H]  decoder bias     (g-gate cols pre-scaled x2)
        wl_ref,    # [H, I]   output linear weight^T (unscaled)
        bl_ref,    # [1, I]   output linear bias     (unscaled)
        out_ref,   # [T_out * Bp, I]  decoder outputs (VMEM)
        h_scr,     # [T_out * Bp, H]  VMEM scratch: collected hidden states
    ):
        H = whe_ref.shape[0]
        H4 = 4 * H

        # Hoist all weights once.
        wie = wie_ref[...]
        whe = whe_ref[...]
        be = be_ref[...]
        wid = wid_ref[...]
        whd = whd_ref[...]
        bd = bd_ref[...]
        wl = wl_ref[...]
        bl = bl_ref[...]

        # ---- one-time precompute (everything here is OFF the recurrent chain) ----
        # Encoder input projection for ALL time steps in one batched matmul.
        gx = jnp.dot(x_ref[...], wie, preferred_element_type=jnp.float32) + be

        # Decoder: project all teacher targets once; fold the output linear into
        # the decoder input weights so the recurrence never consumes `out`.
        tgt_g = jnp.dot(tgt_ref[...], wid, preferred_element_type=jnp.float32)
        w_fold = jnp.dot(wl, wid, preferred_element_type=jnp.float32)   # [H, 4H]
        b_fold = jnp.dot(bl, wid, preferred_element_type=jnp.float32)   # [1, 4H]

        # Pre-broadcast biases once (no per-iteration broadcast_in_dim).
        bd_b = jnp.broadcast_to(bd, (Bp, H4))
        bfold_b = jnp.broadcast_to(b_fold, (Bp, H4))

        # First decoder input = last encoder time step, projected once.
        x_last = x_ref[pl.ds((T_in - 1) * Bp, Bp), :]
        g0 = jnp.dot(x_last, wid, preferred_element_type=jnp.float32) + bd_b

        # Teacher-forcing algebra hoisted out of the recurrence:
        #   step t (t >= 1) uses
        #     w_eff[t-1]  = whd + (1 - tf_{t-1}) * w_fold
        #     extra[t-1]  = tf_{t-1} * (tgt_{t-1} @ wid)
        #                   + (1 - tf_{t-1}) * b_fold + bd
        # so the per-step body is only: dot(h, w_eff) + extra -> gates.
        w_eff = []
        extra = []
        for t in range(1, T_out):
            tf = tf_ref[t - 1].astype(jnp.float32)          # SMEM scalar 0.0/1.0
            w_eff.append(whd + (1.0 - tf) * w_fold)
            tg = tgt_g[(t - 1) * Bp:t * Bp, :]
            extra.append(tf * tg + (1.0 - tf) * bfold_b + bd_b)

        def apply_gates(gates, c):
            # Single full-width sigmoid (one EUP push on the 4H block).  The
            # g-gate preactivation was pre-scaled by 2 in the wrapper, so
            # tanh(x) = 2*sigmoid(2x) - 1 costs only a VPU mul-add here.
            sg = jax.nn.sigmoid(gates)
            i_g = sg[:, 0 * H:1 * H]
            f_g = sg[:, 1 * H:2 * H]
            g_g = 2.0 * sg[:, 2 * H:3 * H] - 1.0
            o_g = sg[:, 3 * H:4 * H]
            c_new = f_g * c + i_g * g_g
            h_new = o_g * jnp.tanh(c_new)
            return h_new, c_new

        # ---------------- encoder (fully unrolled; 1 MXU matmul per step) --------
        h = jnp.zeros((Bp, H), jnp.float32)
        c = jnp.zeros((Bp, H), jnp.float32)
        for t in range(T_in):
            gates = gx[t * Bp:(t + 1) * Bp, :] + jnp.dot(
                h, whe, preferred_element_type=jnp.float32)
            h, c = apply_gates(gates, c)

        # ---------------- decoder (fully unrolled; 1 MXU matmul per step) --------
        gates = g0 + jnp.dot(h, whd, preferred_element_type=jnp.float32)
        h, c = apply_gates(gates, c)
        h_scr[pl.ds(0, Bp), :] = h
        for t in range(1, T_out):
            gates = jnp.dot(h, w_eff[t - 1],
                            preferred_element_type=jnp.float32) + extra[t - 1]
            h, c = apply_gates(gates, c)
            h_scr[pl.ds(t * Bp, Bp), :] = h

        # ---- deferred output projection: ONE matmul + one contiguous 2-D store --
        out_ref[...] = jnp.dot(h_scr[...], wl,
                               preferred_element_type=jnp.float32) + bl

    return kernel


# ----------------------------------------------------------------------------
# Wrapper: PyTorch-style interface (batch-first tensors) around the kernel.
# ----------------------------------------------------------------------------
def _prescale_g_cols(w, H):
    """Scale the g-gate column block [2H, 3H) by 2 so the kernel can evaluate
    all gates with a single sigmoid (tanh(x) = 2*sigmoid(2x) - 1)."""
    scale = jnp.concatenate([
        jnp.ones((2 * H,), jnp.float32),
        jnp.full((H,), 2.0, jnp.float32),
        jnp.ones((H,), jnp.float32),
    ])
    return (w.astype(jnp.float32) * scale[None, :])


def lstm_encoder_decoder_forward(x_input, targets, target_len, tf_mask, params):
    """x_input: [B, T_in, I], targets: [B, T_out, I], tf_mask: [T_out] int32.

    tf_mask plays the role of the per-step `random.random() < teacher_forcing_ratio`
    draws from the PyTorch usage (precomputed host-side for determinism).
    Returns outputs [B, target_len, I].
    """
    B, T_in, I = x_input.shape
    T_out = int(target_len)
    H = params["w_hh_d"].shape[0]

    # Pad batch to a full 8-sublane tile (free: vregs are 8-sublane anyway).
    Bp = max(8, ((B + 7) // 8) * 8)

    # Time-major + flattened 2-D so every in-kernel access is a plain contiguous
    # slice (no in-kernel reshapes / relayouts); XLA does this layout once here.
    x_tm = jnp.transpose(x_input, (1, 0, 2)).astype(jnp.float32)
    tgt_tm = jnp.transpose(targets, (1, 0, 2)).astype(jnp.float32)
    if Bp != B:
        x_tm = jnp.pad(x_tm, ((0, 0), (0, Bp - B), (0, 0)))
        tgt_tm = jnp.pad(tgt_tm, ((0, 0), (0, Bp - B), (0, 0)))
    x2d = x_tm.reshape(T_in * Bp, I)
    tgt2d = tgt_tm.reshape(T_out * Bp, I)

    # g-gate pre-scaling of all LSTM gate weights/biases (not the output linear).
    wie = _prescale_g_cols(params["w_ih_e"], H)
    whe = _prescale_g_cols(params["w_hh_e"], H)
    be = _prescale_g_cols(params["b_e"], H)
    wid = _prescale_g_cols(params["w_ih_d"], H)
    whd = _prescale_g_cols(params["w_hh_d"], H)
    bd = _prescale_g_cols(params["b_d"], H)

    vmem = pl.BlockSpec(memory_space=pltpu.MemorySpace.VMEM)
    smem = pl.BlockSpec(memory_space=pltpu.MemorySpace.SMEM)

    # NOTE: at larger batch a batch-tiled grid with dimension_semantics=
    # ("parallel",) would shard the recurrence across v7x's two TensorCores;
    # at Bp=8 a grid-less call is optimal on all generations.
    out2d = pl.pallas_call(
        _make_encdec_kernel(T_in, T_out, Bp),
        out_shape=jax.ShapeDtypeStruct((T_out * Bp, I), jnp.float32),
        in_specs=[smem, vmem, vmem] + [vmem] * 8,
        out_specs=vmem,
        scratch_shapes=[pltpu.VMEM((T_out * Bp, H), jnp.float32)],
        compiler_params=pltpu.CompilerParams(
            vmem_limit_bytes=32 * 1024 * 1024),
    )(
        tf_mask.astype(jnp.int32),
        x2d,
        tgt2d,
        wie, whe, be,
        wid, whd, bd,
        params["w_lin"].astype(jnp.float32),
        params["b_lin"].astype(jnp.float32),
    )
    out_tm = out2d.reshape(T_out, Bp, I)[:, :B, :]
    return jnp.transpose(out_tm, (1, 0, 2))      # back to [B, T_out, I]


# ----------------------------------------------------------------------------
# Deterministic parameter construction (PyTorch-style uniform(-1/sqrt(H), 1/sqrt(H))).
# ----------------------------------------------------------------------------
def init_params(key, input_size, hidden_size):
    bound = 1.0 / jnp.sqrt(jnp.float32(hidden_size))
    ks = jax.random.split(key, 10)

    def u(k, shape):
        return jax.random.uniform(k, shape, jnp.float32, -bound, bound)

    H4 = 4 * hidden_size
    # Encoder LSTM (stored transposed: [in_dim, 4H]); biases merged (b_ih + b_hh).
    w_ih_e = u(ks[0], (input_size, H4))
    w_hh_e = u(ks[1], (hidden_size, H4))
    b_e = u(ks[2], (1, H4)) + u(ks[3], (1, H4))
    # Decoder LSTM.
    w_ih_d = u(ks[4], (input_size, H4))
    w_hh_d = u(ks[5], (hidden_size, H4))
    b_d = u(ks[6], (1, H4)) + u(ks[7], (1, H4))
    # Output linear: nn.Linear(hidden, input) -> stored transposed [H, I].
    w_lin = u(ks[8], (hidden_size, input_size))
    b_lin = u(ks[9], (1, input_size))
    return dict(
        w_ih_e=w_ih_e, w_hh_e=w_hh_e, b_e=b_e,
        w_ih_d=w_ih_d, w_hh_d=w_hh_d, b_d=b_d,
        w_lin=w_lin, b_lin=b_lin,
    )


# ----------------------------------------------------------------------------
# Pure-JAX reference (mirrors the PyTorch forward) for a correctness check.
# Uses the UNSCALED params and native tanh.
# ----------------------------------------------------------------------------
def reference_forward(x_input, targets, target_len, tf_mask, params):
    B, T_in, I = x_input.shape
    H = params["w_hh_e"].shape[0]

    def lstm_step(x_t, h, c, wi, wh, b):
        gates = x_t @ wi + h @ wh + b
        i_g = jax.nn.sigmoid(gates[:, 0 * H:1 * H])
        f_g = jax.nn.sigmoid(gates[:, 1 * H:2 * H])
        g_g = jnp.tanh(gates[:, 2 * H:3 * H])
        o_g = jax.nn.sigmoid(gates[:, 3 * H:4 * H])
        c_new = f_g * c + i_g * g_g
        return o_g * jnp.tanh(c_new), c_new

    h = jnp.zeros((B, H), jnp.float32)
    c = jnp.zeros((B, H), jnp.float32)
    for t in range(T_in):
        h, c = lstm_step(x_input[:, t, :], h, c,
                         params["w_ih_e"], params["w_hh_e"], params["b_e"])
    dec_in = x_input[:, -1, :]
    outs = []
    for t in range(target_len):
        h, c = lstm_step(dec_in, h, c,
                         params["w_ih_d"], params["w_hh_d"], params["b_d"])
        out = h @ params["w_lin"] + params["b_lin"]
        outs.append(out)
        dec_in = jnp.where(tf_mask[t] > 0, targets[:, t, :], out)
    return jnp.stack(outs, axis=1)


if __name__ == "__main__":
    # Small shapes consistent with the module's forward.
    batch = 2
    input_size = 8
    hidden_size = 32
    seq_len = 8
    target_len = 4
    teacher_forcing_ratio = 0.5

    key = jax.random.PRNGKey(0)
    k_x, k_t, k_p, k_tf = jax.random.split(key, 4)

    x_input = jax.random.normal(k_x, (batch, seq_len, input_size), jnp.float32)
    targets = jax.random.normal(k_t, (batch, target_len, input_size), jnp.float32)
    params = init_params(k_p, input_size, hidden_size)

    # Deterministic stand-in for the per-step `random.random() < ratio` draws.
    tf_mask = jax.random.bernoulli(
        k_tf, teacher_forcing_ratio, (target_len,)
    ).astype(jnp.int32)

    outputs = lstm_encoder_decoder_forward(
        x_input, targets, target_len, tf_mask, params)
    outputs = jax.block_until_ready(outputs)

    ref = reference_forward(x_input, targets, target_len, tf_mask, params)
    assert outputs.shape == (batch, target_len, input_size)
    # Tolerance absorbs the W_lin@W_ih_d fold (f32 reassociation) and the
    # tanh(x)=2*sigmoid(2x)-1 gate rewrite.
    assert jnp.allclose(outputs, ref, rtol=3e-3, atol=3e-3), "mismatch vs reference"

    print("KERNEL_OK")
</pallas_src>

<mosaic_0001>
module attributes {stable_mosaic.version = 11 : i64} {
  func.func @kernel(%arg0: memref<4xi32, #tpu.memory_space<smem>>, %arg1: memref<64x8xf32, #tpu.memory_space<vmem>>, %arg2: memref<32x8xf32, #tpu.memory_space<vmem>>, %arg3: memref<8x128xf32, #tpu.memory_space<vmem>>, %arg4: memref<32x128xf32, #tpu.memory_space<vmem>>, %arg5: memref<1x128xf32, #tpu.memory_space<vmem>>, %arg6: memref<8x128xf32, #tpu.memory_space<vmem>>, %arg7: memref<32x128xf32, #tpu.memory_space<vmem>>, %arg8: memref<1x128xf32, #tpu.memory_space<vmem>>, %arg9: memref<32x8xf32, #tpu.memory_space<vmem>>, %arg10: memref<1x8xf32, #tpu.memory_space<vmem>>, %arg11: memref<32x8xf32, #tpu.memory_space<vmem>>, %arg12: memref<32x32xf32, #tpu.memory_space<vmem>>) attributes {dimension_semantics = [], scalar_prefetch = 0 : i64, scratch_operands = 1 : i64, tpu.core_type = #tpu.core_type<tc>} {
    %c0 = arith.constant 0 : index
    %c0_0 = arith.constant 0 : index
    %0 = vector.load %arg3[%c0, %c0_0] : memref<8x128xf32, #tpu.memory_space<vmem>>, vector<8x128xf32>
    %c0_1 = arith.constant 0 : index
    %c0_2 = arith.constant 0 : index
    %1 = vector.load %arg4[%c0_1, %c0_2] : memref<32x128xf32, #tpu.memory_space<vmem>>, vector<32x128xf32>
    %c0_3 = arith.constant 0 : index
    %c0_4 = arith.constant 0 : index
    %2 = vector.load %arg5[%c0_3, %c0_4] : memref<1x128xf32, #tpu.memory_space<vmem>>, vector<1x128xf32>
    %c0_5 = arith.constant 0 : index
    %c0_6 = arith.constant 0 : index
    %3 = vector.load %arg6[%c0_5, %c0_6] : memref<8x128xf32, #tpu.memory_space<vmem>>, vector<8x128xf32>
    %c0_7 = arith.constant 0 : index
    %c0_8 = arith.constant 0 : index
    %4 = vector.load %arg7[%c0_7, %c0_8] : memref<32x128xf32, #tpu.memory_space<vmem>>, vector<32x128xf32>
    %c0_9 = arith.constant 0 : index
    %c0_10 = arith.constant 0 : index
    %5 = vector.load %arg8[%c0_9, %c0_10] : memref<1x128xf32, #tpu.memory_space<vmem>>, vector<1x128xf32>
    %c0_11 = arith.constant 0 : index
    %c0_12 = arith.constant 0 : index
    %6 = vector.load %arg9[%c0_11, %c0_12] : memref<32x8xf32, #tpu.memory_space<vmem>>, vector<32x8xf32>
    %c0_13 = arith.constant 0 : index
    %c0_14 = arith.constant 0 : index
    %7 = vector.load %arg10[%c0_13, %c0_14] : memref<1x8xf32, #tpu.memory_space<vmem>>, vector<1x8xf32>
    %c0_15 = arith.constant 0 : index
    %c0_16 = arith.constant 0 : index
    %8 = vector.load %arg1[%c0_15, %c0_16] : memref<64x8xf32, #tpu.memory_space<vmem>>, vector<64x8xf32>
    %cst = arith.constant dense<0.000000e+00> : vector<64x128xf32>
    %9 = tpu.matmul %8, %0, %cst {dimension_numbers = #tpu.dot_dimension_numbers<[1], [0], [0], [1], [0, 0, 1, 1], [], []>} : vector<64x8xf32>, vector<8x128xf32>, vector<64x128xf32> -> vector<64x128xf32>
    %10 = vector.broadcast %2 : vector<1x128xf32> to vector<64x128xf32>
    %11 = arith.addf %9, %10 : vector<64x128xf32>
    %c0_17 = arith.constant 0 : index
    %c0_18 = arith.constant 0 : index
    %12 = vector.load %arg2[%c0_17, %c0_18] : memref<32x8xf32, #tpu.memory_space<vmem>>, vector<32x8xf32>
    %cst_19 = arith.constant dense<0.000000e+00> : vector<32x128xf32>
    %13 = tpu.matmul %12, %3, %cst_19 {dimension_numbers = #tpu.dot_dimension_numbers<[1], [0], [0], [1], [0, 0, 1, 1], [], []>} : vector<32x8xf32>, vector<8x128xf32>, vector<32x128xf32> -> vector<32x128xf32>
    %cst_20 = arith.constant dense<0.000000e+00> : vector<32x128xf32>
    %14 = tpu.matmul %6, %3, %cst_20 {dimension_numbers = #tpu.dot_dimension_numbers<[1], [0], [0], [1], [0, 0, 1, 1], [], []>} : vector<32x8xf32>, vector<8x128xf32>, vector<32x128xf32> -> vector<32x128xf32>
    %cst_21 = arith.constant dense<0.000000e+00> : vector<1x128xf32>
    %15 = tpu.matmul %7, %3, %cst_21 {dimension_numbers = #tpu.dot_dimension_numbers<[1], [0], [0], [1], [0, 0, 1, 1], [], []>} : vector<1x8xf32>, vector<8x128xf32>, vector<1x128xf32> -> vector<1x128xf32>
    %16 = vector.shape_cast %5 : vector<1x128xf32> to vector<1x128xf32>
    %17 = vector.broadcast %16 : vector<1x128xf32> to vector<8x128xf32>
    %18 = vector.shape_cast %15 : vector<1x128xf32> to vector<1x128xf32>
    %19 = vector.broadcast %18 : vector<1x128xf32> to vector<8x128xf32>
    %c56 = arith.constant 56 : index
    %c0_22 = arith.constant 0 : index
    %20 = vector.load %arg1[%c56, %c0_22] : memref<64x8xf32, #tpu.memory_space<vmem>>, vector<8x8xf32>
    %cst_23 = arith.constant dense<0.000000e+00> : vector<8x128xf32>
    %21 = tpu.matmul %20, %3, %cst_23 {dimension_numbers = #tpu.dot_dimension_numbers<[1], [0], [0], [1], [0, 0, 1, 1], [], []>} : vector<8x8xf32>, vector<8x128xf32>, vector<8x128xf32> -> vector<8x128xf32>
    %22 = arith.addf %21, %17 : vector<8x128xf32>
    %c0_24 = arith.constant 0 : index
    %23 = memref.load %arg0[%c0_24] : memref<4xi32, #tpu.memory_space<smem>>
    %24 = arith.sitofp %23 : i32 to f32
    %cst_25 = arith.constant 1.000000e+00 : f32
    %25 = arith.subf %cst_25, %24 : f32
    %26 = vector.broadcast %25 : f32 to vector<32x128xf32>
    %27 = arith.mulf %26, %14 : vector<32x128xf32>
    %28 = arith.addf %4, %27 : vector<32x128xf32>
    %29 = vector.extract_strided_slice %13 {offsets = [0, 0], sizes = [8, 128], strides = [1, 1]} : vector<32x128xf32> to vector<8x128xf32>
    %30 = vector.broadcast %24 : f32 to vector<8x128xf32>
    %31 = arith.mulf %30, %29 : vector<8x128xf32>
    %cst_26 = arith.constant 1.000000e+00 : f32
    %32 = arith.subf %cst_26, %24 : f32
    %33 = vector.broadcast %32 : f32 to vector<8x128xf32>
    %34 = arith.mulf %33, %19 : vector<8x128xf32>
    %35 = arith.addf %31, %34 : vector<8x128xf32>
    %36 = arith.addf %35, %17 : vector<8x128xf32>
    %c1 = arith.constant 1 : index
    %37 = memref.load %arg0[%c1] : memref<4xi32, #tpu.memory_space<smem>>
    %38 = arith.sitofp %37 : i32 to f32
    %cst_27 = arith.constant 1.000000e+00 : f32
    %39 = arith.subf %cst_27, %38 : f32
    %40 = vector.broadcast %39 : f32 to vector<32x128xf32>
    %41 = arith.mulf %40, %14 : vector<32x128xf32>
    %42 = arith.addf %4, %41 : vector<32x128xf32>
    %43 = vector.extract_strided_slice %13 {offsets = [8, 0], sizes = [8, 128], strides = [1, 1]} : vector<32x128xf32> to vector<8x128xf32>
    %44 = vector.broadcast %38 : f32 to vector<8x128xf32>
    %45 = arith.mulf %44, %43 : vector<8x128xf32>
    %cst_28 = arith.constant 1.000000e+00 : f32
    %46 = arith.subf %cst_28, %38 : f32
    %47 = vector.broadcast %46 : f32 to vector<8x128xf32>
    %48 = arith.mulf %47, %19 : vector<8x128xf32>
    %49 = arith.addf %45, %48 : vector<8x128xf32>
    %50 = arith.addf %49, %17 : vector<8x128xf32>
    %c2 = arith.constant 2 : index
    %51 = memref.load %arg0[%c2] : memref<4xi32, #tpu.memory_space<smem>>
    %52 = arith.sitofp %51 : i32 to f32
    %cst_29 = arith.constant 1.000000e+00 : f32
    %53 = arith.subf %cst_29, %52 : f32
    %54 = vector.broadcast %53 : f32 to vector<32x128xf32>
    %55 = arith.mulf %54, %14 : vector<32x128xf32>
    %56 = arith.addf %4, %55 : vector<32x128xf32>
    %57 = vector.extract_strided_slice %13 {offsets = [16, 0], sizes = [8, 128], strides = [1, 1]} : vector<32x128xf32> to vector<8x128xf32>
    %58 = vector.broadcast %52 : f32 to vector<8x128xf32>
    %59 = arith.mulf %58, %57 : vector<8x128xf32>
    %cst_30 = arith.constant 1.000000e+00 : f32
    %60 = arith.subf %cst_30, %52 : f32
    %61 = vector.broadcast %60 : f32 to vector<8x128xf32>
    %62 = arith.mulf %61, %19 : vector<8x128xf32>
    %63 = arith.addf %59, %62 : vector<8x128xf32>
    %64 = arith.addf %63, %17 : vector<8x128xf32>
    %cst_31 = arith.constant 0.000000e+00 : f32
    %65 = vector.broadcast %cst_31 : f32 to vector<8x32xf32>
    %cst_32 = arith.constant 0.000000e+00 : f32
    %66 = vector.broadcast %cst_32 : f32 to vector<8x32xf32>
    %67 = vector.extract_strided_slice %11 {offsets = [0, 0], sizes = [8, 128], strides = [1, 1]} : vector<64x128xf32> to vector<8x128xf32>
    %cst_33 = arith.constant dense<0.000000e+00> : vector<8x128xf32>
    %68 = tpu.matmul %65, %1, %cst_33 {dimension_numbers = #tpu.dot_dimension_numbers<[1], [0], [0], [1], [0, 0, 1, 1], [], []>} : vector<8x32xf32>, vector<32x128xf32>, vector<8x128xf32> -> vector<8x128xf32>
    %69 = arith.addf %67, %68 : vector<8x128xf32>
    %70 = arith.negf %69 : vector<8x128xf32>
    %71 = math.exp %70 : vector<8x128xf32>
    %cst_34 = arith.constant 1.000000e+00 : f32
    %72 = vector.broadcast %cst_34 : f32 to vector<8x128xf32>
    %73 = arith.addf %72, %71 : vector<8x128xf32>
    %74 = arith.divf %72, %73 : vector<8x128xf32>
    %75 = vector.extract_strided_slice %74 {offsets = [0, 0], sizes = [8, 32], strides = [1, 1]} : vector<8x128xf32> to vector<8x32xf32>
    %76 = vector.extract_strided_slice %74 {offsets = [0, 32], sizes = [8, 32], strides = [1, 1]} : vector<8x128xf32> to vector<8x32xf32>
    %77 = vector.extract_strided_slice %74 {offsets = [0, 64], sizes = [8, 32], strides = [1, 1]} : vector<8x128xf32> to vector<8x32xf32>
    %cst_35 = arith.constant 2.000000e+00 : f32
    %78 = vector.broadcast %cst_35 : f32 to vector<8x32xf32>
    %79 = arith.mulf %78, %77 : vector<8x32xf32>
    %cst_36 = arith.constant 1.000000e+00 : f32
    %80 = vector.broadcast %cst_36 : f32 to vector<8x32xf32>
    %81 = arith.subf %79, %80 : vector<8x32xf32>
    %82 = vector.extract_strided_slice %74 {offsets = [0, 96], sizes = [8, 32], strides = [1, 1]} : vector<8x128xf32> to vector<8x32xf32>
    %83 = arith.mulf %76, %66 : vector<8x32xf32>
    %84 = arith.mulf %75, %81 : vector<8x32xf32>
    %85 = arith.addf %83, %84 : vector<8x32xf32>
    %86 = math.tanh %85 : vector<8x32xf32>
    %87 = arith.mulf %82, %86 : vector<8x32xf32>
    %88 = vector.extract_strided_slice %11 {offsets = [8, 0], sizes = [8, 128], strides = [1, 1]} : vector<64x128xf32> to vector<8x128xf32>
    %cst_37 = arith.constant dense<0.000000e+00> : vector<8x128xf32>
    %89 = tpu.matmul %87, %1, %cst_37 {dimension_numbers = #tpu.dot_dimension_numbers<[1], [0], [0], [1], [0, 0, 1, 1], [], []>} : vector<8x32xf32>, vector<32x128xf32>, vector<8x128xf32> -> vector<8x128xf32>
    %90 = arith.addf %88, %89 : vector<8x128xf32>
    %91 = arith.negf %90 : vector<8x128xf32>
    %92 = math.exp %91 : vector<8x128xf32>
    %cst_38 = arith.constant 1.000000e+00 : f32
    %93 = vector.broadcast %cst_38 : f32 to vector<8x128xf32>
    %94 = arith.addf %93, %92 : vector<8x128xf32>
    %95 = arith.divf %93, %94 : vector<8x128xf32>
    %96 = vector.extract_strided_slice %95 {offsets = [0, 0], sizes = [8, 32], strides = [1, 1]} : vector<8x128xf32> to vector<8x32xf32>
    %97 = vector.extract_strided_slice %95 {offsets = [0, 32], sizes = [8, 32], strides = [1, 1]} : vector<8x128xf32> to vector<8x32xf32>
    %98 = vector.extract_strided_slice %95 {offsets = [0, 64], sizes = [8, 32], strides = [1, 1]} : vector<8x128xf32> to vector<8x32xf32>
    %cst_39 = arith.constant 2.000000e+00 : f32
    %99 = vector.broadcast %cst_39 : f32 to vector<8x32xf32>
    %100 = arith.mulf %99, %98 : vector<8x32xf32>
    %cst_40 = arith.constant 1.000000e+00 : f32
    %101 = vector.broadcast %cst_40 : f32 to vector<8x32xf32>
    %102 = arith.subf %100, %101 : vector<8x32xf32>
    %103 = vector.extract_strided_slice %95 {offsets = [0, 96], sizes = [8, 32], strides = [1, 1]} : vector<8x128xf32> to vector<8x32xf32>
    %104 = arith.mulf %97, %85 : vector<8x32xf32>
    %105 = arith.mulf %96, %102 : vector<8x32xf32>
    %106 = arith.addf %104, %105 : vector<8x32xf32>
    %107 = math.tanh %106 : vector<8x32xf32>
    %108 = arith.mulf %103, %107 : vector<8x32xf32>
    %109 = vector.extract_strided_slice %11 {offsets = [16, 0], sizes = [8, 128], strides = [1, 1]} : vector<64x128xf32> to vector<8x128xf32>
    %cst_41 = arith.constant dense<0.000000e+00> : vector<8x128xf32>
    %110 = tpu.matmul %108, %1, %cst_41 {dimension_numbers = #tpu.dot_dimension_numbers<[1], [0], [0], [1], [0, 0, 1, 1], [], []>} : vector<8x32xf32>, vector<32x128xf32>, vector<8x128xf32> -> vector<8x128xf32>
    %111 = arith.addf %109, %110 : vector<8x128xf32>
    %112 = arith.negf %111 : vector<8x128xf32>
    %113 = math.exp %112 : vector<8x128xf32>
    %cst_42 = arith.constant 1.000000e+00 : f32
    %114 = vector.broadcast %cst_42 : f32 to vector<8x128xf32>
    %115 = arith.addf %114, %113 : vector<8x128xf32>
    %116 = arith.divf %114, %115 : vector<8x128xf32>
    %117 = vector.extract_strided_slice %116 {offsets = [0, 0], sizes = [8, 32], strides = [1, 1]} : vector<8x128xf32> to vector<8x32xf32>
    %118 = vector.extract_strided_slice %116 {offsets = [0, 32], sizes = [8, 32], strides = [1, 1]} : vector<8x128xf32> to vector<8x32xf32>
    %119 = vector.extract_strided_slice %116 {offsets = [0, 64], sizes = [8, 32], strides = [1, 1]} : vector<8x128xf32> to vector<8x32xf32>
    %cst_43 = arith.constant 2.000000e+00 : f32
    %120 = vector.broadcast %cst_43 : f32 to vector<8x32xf32>
    %121 = arith.mulf %120, %119 : vector<8x32xf32>
    %cst_44 = arith.constant 1.000000e+00 : f32
    %122 = vector.broadcast %cst_44 : f32 to vector<8x32xf32>
    %123 = arith.subf %121, %122 : vector<8x32xf32>
    %124 = vector.extract_strided_slice %116 {offsets = [0, 96], sizes = [8, 32], strides = [1, 1]} : vector<8x128xf32> to vector<8x32xf32>
    %125 = arith.mulf %118, %106 : vector<8x32xf32>
    %126 = arith.mulf %117, %123 : vector<8x32xf32>
    %127 = arith.addf %125, %126 : vector<8x32xf32>
    %128 = math.tanh %127 : vector<8x32xf32>
    %129 = arith.mulf %124, %128 : vector<8x32xf32>
    %130 = vector.extract_strided_slice %11 {offsets = [24, 0], sizes = [8, 128], strides = [1, 1]} : vector<64x128xf32> to vector<8x128xf32>
    %cst_45 = arith.constant dense<0.000000e+00> : vector<8x128xf32>
    %131 = tpu.matmul %129, %1, %cst_45 {dimension_numbers = #tpu.dot_dimension_numbers<[1], [0], [0], [1], [0, 0, 1, 1], [], []>} : vector<8x32xf32>, vector<32x128xf32>, vector<8x128xf32> -> vector<8x128xf32>
    %132 = arith.addf %130, %131 : vector<8x128xf32>
    %133 = arith.negf %132 : vector<8x128xf32>
    %134 = math.exp %133 : vector<8x128xf32>
    %cst_46 = arith.constant 1.000000e+00 : f32
    %135 = vector.broadcast %cst_46 : f32 to vector<8x128xf32>
    %136 = arith.addf %135, %134 : vector<8x128xf32>
    %137 = arith.divf %135, %136 : vector<8x128xf32>
    %138 = vector.extract_strided_slice %137 {offsets = [0, 0], sizes = [8, 32], strides = [1, 1]} : vector<8x128xf32> to vector<8x32xf32>
    %139 = vector.extract_strided_slice %137 {offsets = [0, 32], sizes = [8, 32], strides = [1, 1]} : vector<8x128xf32> to vector<8x32xf32>
    %140 = vector.extract_strided_slice %137 {offsets = [0, 64], sizes = [8, 32], strides = [1, 1]} : vector<8x128xf32> to vector<8x32xf32>
    %cst_47 = arith.constant 2.000000e+00 : f32
    %141 = vector.broadcast %cst_47 : f32 to vector<8x32xf32>
    %142 = arith.mulf %141, %140 : vector<8x32xf32>
    %cst_48 = arith.constant 1.000000e+00 : f32
    %143 = vector.broadcast %cst_48 : f32 to vector<8x32xf32>
    %144 = arith.subf %142, %143 : vector<8x32xf32>
    %145 = vector.extract_strided_slice %137 {offsets = [0, 96], sizes = [8, 32], strides = [1, 1]} : vector<8x128xf32> to vector<8x32xf32>
    %146 = arith.mulf %139, %127 : vector<8x32xf32>
    %147 = arith.mulf %138, %144 : vector<8x32xf32>
    %148 = arith.addf %146, %147 : vector<8x32xf32>
    %149 = math.tanh %148 : vector<8x32xf32>
    %150 = arith.mulf %145, %149 : vector<8x32xf32>
    %151 = vector.extract_strided_slice %11 {offsets = [32, 0], sizes = [8, 128], strides = [1, 1]} : vector<64x128xf32> to vector<8x128xf32>
    %cst_49 = arith.constant dense<0.000000e+00> : vector<8x128xf32>
    %152 = tpu.matmul %150, %1, %cst_49 {dimension_numbers = #tpu.dot_dimension_numbers<[1], [0], [0], [1], [0, 0, 1, 1], [], []>} : vector<8x32xf32>, vector<32x128xf32>, vector<8x128xf32> -> vector<8x128xf32>
    %153 = arith.addf %151, %152 : vector<8x128xf32>
    %154 = arith.negf %153 : vector<8x128xf32>
    %155 = math.exp %154 : vector<8x128xf32>
    %cst_50 = arith.constant 1.000000e+00 : f32
    %156 = vector.broadcast %cst_50 : f32 to vector<8x128xf32>
    %157 = arith.addf %156, %155 : vector<8x128xf32>
    %158 = arith.divf %156, %157 : vector<8x128xf32>
    %159 = vector.extract_strided_slice %158 {offsets = [0, 0], sizes = [8, 32], strides = [1, 1]} : vector<8x128xf32> to vector<8x32xf32>
    %160 = vector.extract_strided_slice %158 {offsets = [0, 32], sizes = [8, 32], strides = [1, 1]} : vector<8x128xf32> to vector<8x32xf32>
    %161 = vector.extract_strided_slice %158 {offsets = [0, 64], sizes = [8, 32], strides = [1, 1]} : vector<8x128xf32> to vector<8x32xf32>
    %cst_51 = arith.constant 2.000000e+00 : f32
    %162 = vector.broadcast %cst_51 : f32 to vector<8x32xf32>
    %163 = arith.mulf %162, %161 : vector<8x32xf32>
    %cst_52 = arith.constant 1.000000e+00 : f32
    %164 = vector.broadcast %cst_52 : f32 to vector<8x32xf32>
    %165 = arith.subf %163, %164 : vector<8x32xf32>
    %166 = vector.extract_strided_slice %158 {offsets = [0, 96], sizes = [8, 32], strides = [1, 1]} : vector<8x128xf32> to vector<8x32xf32>
    %167 = arith.mulf %160, %148 : vector<8x32xf32>
    %168 = arith.mulf %159, %165 : vector<8x32xf32>
    %169 = arith.addf %167, %168 : vector<8x32xf32>
    %170 = math.tanh %169 : vector<8x32xf32>
    %171 = arith.mulf %166, %170 : vector<8x32xf32>
    %172 = vector.extract_strided_slice %11 {offsets = [40, 0], sizes = [8, 128], strides = [1, 1]} : vector<64x128xf32> to vector<8x128xf32>
    %cst_53 = arith.constant dense<0.000000e+00> : vector<8x128xf32>
    %173 = tpu.matmul %171, %1, %cst_53 {dimension_numbers = #tpu.dot_dimension_numbers<[1], [0], [0], [1], [0, 0, 1, 1], [], []>} : vector<8x32xf32>, vector<32x128xf32>, vector<8x128xf32> -> vector<8x128xf32>
    %174 = arith.addf %172, %173 : vector<8x128xf32>
    %175 = arith.negf %174 : vector<8x128xf32>
    %176 = math.exp %175 : vector<8x128xf32>
    %cst_54 = arith.constant 1.000000e+00 : f32
    %177 = vector.broadcast %cst_54 : f32 to vector<8x128xf32>
    %178 = arith.addf %177, %176 : vector<8x128xf32>
    %179 = arith.divf %177, %178 : vector<8x128xf32>
    %180 = vector.extract_strided_slice %179 {offsets = [0, 0], sizes = [8, 32], strides = [1, 1]} : vector<8x128xf32> to vector<8x32xf32>
    %181 = vector.extract_strided_slice %179 {offsets = [0, 32], sizes = [8, 32], strides = [1, 1]} : vector<8x128xf32> to vector<8x32xf32>
    %182 = vector.extract_strided_slice %179 {offsets = [0, 64], sizes = [8, 32], strides = [1, 1]} : vector<8x128xf32> to vector<8x32xf32>
    %cst_55 = arith.constant 2.000000e+00 : f32
    %183 = vector.broadcast %cst_55 : f32 to vector<8x32xf32>
    %184 = arith.mulf %183, %182 : vector<8x32xf32>
    %cst_56 = arith.constant 1.000000e+00 : f32
    %185 = vector.broadcast %cst_56 : f32 to vector<8x32xf32>
    %186 = arith.subf %184, %185 : vector<8x32xf32>
    %187 = vector.extract_strided_slice %179 {offsets = [0, 96], sizes = [8, 32], strides = [1, 1]} : vector<8x128xf32> to vector<8x32xf32>
    %188 = arith.mulf %181, %169 : vector<8x32xf32>
    %189 = arith.mulf %180, %186 : vector<8x32xf32>
    %190 = arith.addf %188, %189 : vector<8x32xf32>
    %191 = math.tanh %190 : vector<8x32xf32>
    %192 = arith.mulf %187, %191 : vector<8x32xf32>
    %193 = vector.extract_strided_slice %11 {offsets = [48, 0], sizes = [8, 128], strides = [1, 1]} : vector<64x128xf32> to vector<8x128xf32>
    %cst_57 = arith.constant dense<0.000000e+00> : vector<8x128xf32>
    %194 = tpu.matmul %192, %1, %cst_57 {dimension_numbers = #tpu.dot_dimension_numbers<[1], [0], [0], [1], [0, 0, 1, 1], [], []>} : vector<8x32xf32>, vector<32x128xf32>, vector<8x128xf32> -> vector<8x128xf32>
    %195 = arith.addf %193, %194 : vector<8x128xf32>
    %196 = arith.negf %195 : vector<8x128xf32>
    %197 = math.exp %196 : vector<8x128xf32>
    %cst_58 = arith.constant 1.000000e+00 : f32
    %198 = vector.broadcast %cst_58 : f32 to vector<8x128xf32>
    %199 = arith.addf %198, %197 : vector<8x128xf32>
    %200 = arith.divf %198, %199 : vector<8x128xf32>
    %201 = vector.extract_strided_slice %200 {offsets = [0, 0], sizes = [8, 32], strides = [1, 1]} : vector<8x128xf32> to vector<8x32xf32>
    %202 = vector.extract_strided_slice %200 {offsets = [0, 32], sizes = [8, 32], strides = [1, 1]} : vector<8x128xf32> to vector<8x32xf32>
    %203 = vector.extract_strided_slice %200 {offsets = [0, 64], sizes = [8, 32], strides = [1, 1]} : vector<8x128xf32> to vector<8x32xf32>
    %cst_59 = arith.constant 2.000000e+00 : f32
    %204 = vector.broadcast %cst_59 : f32 to vector<8x32xf32>
    %205 = arith.mulf %204, %203 : vector<8x32xf32>
    %cst_60 = arith.constant 1.000000e+00 : f32
    %206 = vector.broadcast %cst_60 : f32 to vector<8x32xf32>
    %207 = arith.subf %205, %206 : vector<8x32xf32>
    %208 = vector.extract_strided_slice %200 {offsets = [0, 96], sizes = [8, 32], strides = [1, 1]} : vector<8x128xf32> to vector<8x32xf32>
    %209 = arith.mulf %202, %190 : vector<8x32xf32>
    %210 = arith.mulf %201, %207 : vector<8x32xf32>
    %211 = arith.addf %209, %210 : vector<8x32xf32>
    %212 = math.tanh %211 : vector<8x32xf32>
    %213 = arith.mulf %208, %212 : vector<8x32xf32>
    %214 = vector.extract_strided_slice %11 {offsets = [56, 0], sizes = [8, 128], strides = [1, 1]} : vector<64x128xf32> to vector<8x128xf32>
    %cst_61 = arith.constant dense<0.000000e+00> : vector<8x128xf32>
    %215 = tpu.matmul %213, %1, %cst_61 {dimension_numbers = #tpu.dot_dimension_numbers<[1], [0], [0], [1], [0, 0, 1, 1], [], []>} : vector<8x32xf32>, vector<32x128xf32>, vector<8x128xf32> -> vector<8x128xf32>
    %216 = arith.addf %214, %215 : vector<8x128xf32>
    %217 = arith.negf %216 : vector<8x128xf32>
    %218 = math.exp %217 : vector<8x128xf32>
    %cst_62 = arith.constant 1.000000e+00 : f32
    %219 = vector.broadcast %cst_62 : f32 to vector<8x128xf32>
    %220 = arith.addf %219, %218 : vector<8x128xf32>
    %221 = arith.divf %219, %220 : vector<8x128xf32>
    %222 = vector.extract_strided_slice %221 {offsets = [0, 0], sizes = [8, 32], strides = [1, 1]} : vector<8x128xf32> to vector<8x32xf32>
    %223 = vector.extract_strided_slice %221 {offsets = [0, 32], sizes = [8, 32], strides = [1, 1]} : vector<8x128xf32> to vector<8x32xf32>
    %224 = vector.extract_strided_slice %221 {offsets = [0, 64], sizes = [8, 32], strides = [1, 1]} : vector<8x128xf32> to vector<8x32xf32>
    %cst_63 = arith.constant 2.000000e+00 : f32
    %225 = vector.broadcast %cst_63 : f32 to vector<8x32xf32>
    %226 = arith.mulf %225, %224 : vector<8x32xf32>
    %cst_64 = arith.constant 1.000000e+00 : f32
    %227 = vector.broadcast %cst_64 : f32 to vector<8x32xf32>
    %228 = arith.subf %226, %227 : vector<8x32xf32>
    %229 = vector.extract_strided_slice %221 {offsets = [0, 96], sizes = [8, 32], strides = [1, 1]} : vector<8x128xf32> to vector<8x32xf32>
    %230 = arith.mulf %223, %211 : vector<8x32xf32>
    %231 = arith.mulf %222, %228 : vector<8x32xf32>
    %232 = arith.addf %230, %231 : vector<8x32xf32>
    %233 = math.tanh %232 : vector<8x32xf32>
    %234 = arith.mulf %229, %233 : vector<8x32xf32>
    %cst_65 = arith.constant dense<0.000000e+00> : vector<8x128xf32>
    %235 = tpu.matmul %234, %4, %cst_65 {dimension_numbers = #tpu.dot_dimension_numbers<[1], [0], [0], [1], [0, 0, 1, 1], [], []>} : vector<8x32xf32>, vector<32x128xf32>, vector<8x128xf32> -> vector<8x128xf32>
    %236 = arith.addf %22, %235 : vector<8x128xf32>
    %237 = arith.negf %236 : vector<8x128xf32>
    %238 = math.exp %237 : vector<8x128xf32>
    %cst_66 = arith.constant 1.000000e+00 : f32
    %239 = vector.broadcast %cst_66 : f32 to vector<8x128xf32>
    %240 = arith.addf %239, %238 : vector<8x128xf32>
    %241 = arith.divf %239, %240 : vector<8x128xf32>
    %242 = vector.extract_strided_slice %241 {offsets = [0, 0], sizes = [8, 32], strides = [1, 1]} : vector<8x128xf32> to vector<8x32xf32>
    %243 = vector.extract_strided_slice %241 {offsets = [0, 32], sizes = [8, 32], strides = [1, 1]} : vector<8x128xf32> to vector<8x32xf32>
    %244 = vector.extract_strided_slice %241 {offsets = [0, 64], sizes = [8, 32], strides = [1, 1]} : vector<8x128xf32> to vector<8x32xf32>
    %cst_67 = arith.constant 2.000000e+00 : f32
    %245 = vector.broadcast %cst_67 : f32 to vector<8x32xf32>
    %246 = arith.mulf %245, %244 : vector<8x32xf32>
    %cst_68 = arith.constant 1.000000e+00 : f32
    %247 = vector.broadcast %cst_68 : f32 to vector<8x32xf32>
    %248 = arith.subf %246, %247 : vector<8x32xf32>
    %249 = vector.extract_strided_slice %241 {offsets = [0, 96], sizes = [8, 32], strides = [1, 1]} : vector<8x128xf32> to vector<8x32xf32>
    %250 = arith.mulf %243, %232 : vector<8x32xf32>
    %251 = arith.mulf %242, %248 : vector<8x32xf32>
    %252 = arith.addf %250, %251 : vector<8x32xf32>
    %253 = math.tanh %252 : vector<8x32xf32>
    %254 = arith.mulf %249, %253 : vector<8x32xf32>
    %c0_69 = arith.constant 0 : index
    %c0_70 = arith.constant 0 : index
    %255 = vector.load %arg12[%c0_69, %c0_70] : memref<32x32xf32, #tpu.memory_space<vmem>>, vector<8x32xf32>
    tpu.vector_store %arg12[%c0_69, %c0_70], %254 {strides = array<i32>} : memref<32x32xf32, #tpu.memory_space<vmem>>, vector<8x32xf32>,
    %cst_71 = arith.constant dense<0.000000e+00> : vector<8x128xf32>
    %256 = tpu.matmul %254, %28, %cst_71 {dimension_numbers = #tpu.dot_dimension_numbers<[1], [0], [0], [1], [0, 0, 1, 1], [], []>} : vector<8x32xf32>, vector<32x128xf32>, vector<8x128xf32> -> vector<8x128xf32>
    %257 = arith.addf %256, %36 : vector<8x128xf32>
    %258 = arith.negf %257 : vector<8x128xf32>
    %259 = math.exp %258 : vector<8x128xf32>
    %cst_72 = arith.constant 1.000000e+00 : f32
    %260 = vector.broadcast %cst_72 : f32 to vector<8x128xf32>
    %261 = arith.addf %260, %259 : vector<8x128xf32>
    %262 = arith.divf %260, %261 : vector<8x128xf32>
    %263 = vector.extract_strided_slice %262 {offsets = [0, 0], sizes = [8, 32], strides = [1, 1]} : vector<8x128xf32> to vector<8x32xf32>
    %264 = vector.extract_strided_slice %262 {offsets = [0, 32], sizes = [8, 32], strides = [1, 1]} : vector<8x128xf32> to vector<8x32xf32>
    %265 = vector.extract_strided_slice %262 {offsets = [0, 64], sizes = [8, 32], strides = [1, 1]} : vector<8x128xf32> to vector<8x32xf32>
    %cst_73 = arith.constant 2.000000e+00 : f32
    %266 = vector.broadcast %cst_73 : f32 to vector<8x32xf32>
    %267 = arith.mulf %266, %265 : vector<8x32xf32>
    %cst_74 = arith.constant 1.000000e+00 : f32
    %268 = vector.broadcast %cst_74 : f32 to vector<8x32xf32>
    %269 = arith.subf %267, %268 : vector<8x32xf32>
    %270 = vector.extract_strided_slice %262 {offsets = [0, 96], sizes = [8, 32], strides = [1, 1]} : vector<8x128xf32> to vector<8x32xf32>
    %271 = arith.mulf %264, %252 : vector<8x32xf32>
    %272 = arith.mulf %263, %269 : vector<8x32xf32>
    %273 = arith.addf %271, %272 : vector<8x32xf32>
    %274 = math.tanh %273 : vector<8x32xf32>
    %275 = arith.mulf %270, %274 : vector<8x32xf32>
    %c8 = arith.constant 8 : index
    %c0_75 = arith.constant 0 : index
    %276 = vector.load %arg12[%c8, %c0_75] : memref<32x32xf32, #tpu.memory_space<vmem>>, vector<8x32xf32>
    tpu.vector_store %arg12[%c8, %c0_75], %275 {strides = array<i32>} : memref<32x32xf32, #tpu.memory_space<vmem>>, vector<8x32xf32>,
    %cst_76 = arith.constant dense<0.000000e+00> : vector<8x128xf32>
    %277 = tpu.matmul %275, %42, %cst_76 {dimension_numbers = #tpu.dot_dimension_numbers<[1], [0], [0], [1], [0, 0, 1, 1], [], []>} : vector<8x32xf32>, vector<32x128xf32>, vector<8x128xf32> -> vector<8x128xf32>
    %278 = arith.addf %277, %50 : vector<8x128xf32>
    %279 = arith.negf %278 : vector<8x128xf32>
    %280 = math.exp %279 : vector<8x128xf32>
    %cst_77 = arith.constant 1.000000e+00 : f32
    %281 = vector.broadcast %cst_77 : f32 to vector<8x128xf32>
    %282 = arith.addf %281, %280 : vector<8x128xf32>
    %283 = arith.divf %281, %282 : vector<8x128xf32>
    %284 = vector.extract_strided_slice %283 {offsets = [0, 0], sizes = [8, 32], strides = [1, 1]} : vector<8x128xf32> to vector<8x32xf32>
    %285 = vector.extract_strided_slice %283 {offsets = [0, 32], sizes = [8, 32], strides = [1, 1]} : vector<8x128xf32> to vector<8x32xf32>
    %286 = vector.extract_strided_slice %283 {offsets = [0, 64], sizes = [8, 32], strides = [1, 1]} : vector<8x128xf32> to vector<8x32xf32>
    %cst_78 = arith.constant 2.000000e+00 : f32
    %287 = vector.broadcast %cst_78 : f32 to vector<8x32xf32>
    %288 = arith.mulf %287, %286 : vector<8x32xf32>
    %cst_79 = arith.constant 1.000000e+00 : f32
    %289 = vector.broadcast %cst_79 : f32 to vector<8x32xf32>
    %290 = arith.subf %288, %289 : vector<8x32xf32>
    %291 = vector.extract_strided_slice %283 {offsets = [0, 96], sizes = [8, 32], strides = [1, 1]} : vector<8x128xf32> to vector<8x32xf32>
    %292 = arith.mulf %285, %273 : vector<8x32xf32>
    %293 = arith.mulf %284, %290 : vector<8x32xf32>
    %294 = arith.addf %292, %293 : vector<8x32xf32>
    %295 = math.tanh %294 : vector<8x32xf32>
    %296 = arith.mulf %291, %295 : vector<8x32xf32>
    %c16 = arith.constant 16 : index
    %c0_80 = arith.constant 0 : index
    %297 = vector.load %arg12[%c16, %c0_80] : memref<32x32xf32, #tpu.memory_space<vmem>>, vector<8x32xf32>
    tpu.vector_store %arg12[%c16, %c0_80], %296 {strides = array<i32>} : memref<32x32xf32, #tpu.memory_space<vmem>>, vector<8x32xf32>,
    %cst_81 = arith.constant dense<0.000000e+00> : vector<8x128xf32>
    %298 = tpu.matmul %296, %56, %cst_81 {dimension_numbers = #tpu.dot_dimension_numbers<[1], [0], [0], [1], [0, 0, 1, 1], [], []>} : vector<8x32xf32>, vector<32x128xf32>, vector<8x128xf32> -> vector<8x128xf32>
    %299 = arith.addf %298, %64 : vector<8x128xf32>
    %300 = arith.negf %299 : vector<8x128xf32>
    %301 = math.exp %300 : vector<8x128xf32>
    %cst_82 = arith.constant 1.000000e+00 : f32
    %302 = vector.broadcast %cst_82 : f32 to vector<8x128xf32>
    %303 = arith.addf %302, %301 : vector<8x128xf32>
    %304 = arith.divf %302, %303 : vector<8x128xf32>
    %305 = vector.extract_strided_slice %304 {offsets = [0, 0], sizes = [8, 32], strides = [1, 1]} : vector<8x128xf32> to vector<8x32xf32>
    %306 = vector.extract_strided_slice %304 {offsets = [0, 32], sizes = [8, 32], strides = [1, 1]} : vector<8x128xf32> to vector<8x32xf32>
    %307 = vector.extract_strided_slice %304 {offsets = [0, 64], sizes = [8, 32], strides = [1, 1]} : vector<8x128xf32> to vector<8x32xf32>
    %cst_83 = arith.constant 2.000000e+00 : f32
    %308 = vector.broadcast %cst_83 : f32 to vector<8x32xf32>
    %309 = arith.mulf %308, %307 : vector<8x32xf32>
    %cst_84 = arith.constant 1.000000e+00 : f32
    %310 = vector.broadcast %cst_84 : f32 to vector<8x32xf32>
    %311 = arith.subf %309, %310 : vector<8x32xf32>
    %312 = vector.extract_strided_slice %304 {offsets = [0, 96], sizes = [8, 32], strides = [1, 1]} : vector<8x128xf32> to vector<8x32xf32>
    %313 = arith.mulf %306, %294 : vector<8x32xf32>
    %314 = arith.mulf %305, %311 : vector<8x32xf32>
    %315 = arith.addf %313, %314 : vector<8x32xf32>
    %316 = math.tanh %315 : vector<8x32xf32>
    %317 = arith.mulf %312, %316 : vector<8x32xf32>
    %c24 = arith.constant 24 : index
    %c0_85 = arith.constant 0 : index
    %318 = vector.load %arg12[%c24, %c0_85] : memref<32x32xf32, #tpu.memory_space<vmem>>, vector<8x32xf32>
    tpu.vector_store %arg12[%c24, %c0_85], %317 {strides = array<i32>} : memref<32x32xf32, #tpu.memory_space<vmem>>, vector<8x32xf32>,
    %c0_86 = arith.constant 0 : index
    %c0_87 = arith.constant 0 : index
    %319 = vector.load %arg12[%c0_86, %c0_87] : memref<32x32xf32, #tpu.memory_space<vmem>>, vector<32x32xf32>
    %cst_88 = arith.constant dense<0.000000e+00> : vector<32x8xf32>
    %320 = tpu.matmul %319, %6, %cst_88 {dimension_numbers = #tpu.dot_dimension_numbers<[1], [0], [0], [1], [0, 0, 1, 1], [], []>} : vector<32x32xf32>, vector<32x8xf32>, vector<32x8xf32> -> vector<32x8xf32>
    %321 = vector.broadcast %7 : vector<1x8xf32> to vector<32x8xf32>
    %322 = arith.addf %320, %321 : vector<32x8xf32>
    %c0_89 = arith.constant 0 : index
    %c0_90 = arith.constant 0 : index
    %323 = vector.load %arg11[%c0_89, %c0_90] : memref<32x8xf32, #tpu.memory_space<vmem>>, vector<32x8xf32>
    tpu.vector_store %arg11[%c0_89, %c0_90], %322 {strides = array<i32>} : memref<32x8xf32, #tpu.memory_space<vmem>>, vector<32x8xf32>,
    return
  }
}

</mosaic_0001>

<llo_original>
// kernel: tpu_custom_call.1
$region0: #{tpu_custom_call.1}
  #allocation0 [shape = 'u32[]', space=smem, size = 0x4, offset = 0x4, fixed_abs, tag = 'smem constant byte address 0x4 - core index']
  #allocation1 [shape = 'u32[144,128]{1,0:T(1,128)}', space=vmem, size = 0x12000, scoped, tag = 'internal scratch']
  #allocation2 [shape = 'f32[32,32]{1,0:T(8,128)}', space=vmem, size = 0x4000, scoped, tag = 'scratch operand']
  %s0 = inlined_call_operand.vmem [shape: s32[4], index: 0, kind: input, shape index: {}]
  %s1 = inlined_call_operand.vmem [shape: f32[64,8], index: 1, kind: input, shape index: {}]
  %s2 = inlined_call_operand.vmem [shape: f32[32,8], index: 2, kind: input, shape index: {}]
  %s3 = inlined_call_operand.vmem [shape: f32[8,128], index: 3, kind: input, shape index: {}]
  %s4 = inlined_call_operand.vmem [shape: f32[32,128], index: 4, kind: input, shape index: {}]
  %s5 = inlined_call_operand.vmem [shape: f32[1,128], index: 5, kind: input, shape index: {}]
  %s6 = inlined_call_operand.vmem [shape: f32[8,128], index: 6, kind: input, shape index: {}]
  %s7 = inlined_call_operand.vmem [shape: f32[32,128], index: 7, kind: input, shape index: {}]
  %s8 = inlined_call_operand.vmem [shape: f32[1,128], index: 8, kind: input, shape index: {}]
  %s9 = inlined_call_operand.vmem [shape: f32[32,8], index: 9, kind: input, shape index: {}]
  %s10 = inlined_call_operand.vmem [shape: f32[1,8], index: 10, kind: input, shape index: {}]
  %s11 = inlined_call_operand.vmem [shape: f32[32,8], index: 11, kind: output, shape index: {}]
  %s12 = sld [smem:[#allocation0]]
  $region58: #{tpu_custom_call.1} parent=0
    _
  %s14 = ssub.s32 1, %s12
  %s15 = scalar_select 0, %s14, %s12
  $region1: #{tpu_custom_call.1} parent=0
    #allocation3 [shape = 'u8[512]{0}', space=smem, size = 0x200, scoped, tag = 'input window, operand 0, single buffered']
    #allocation4 [shape = 's32[1]{0}', space=sflag, size = 0x4, scoped, tag = 'scoped memory for tpu_custom_call.1']
    %16 = vsyncpa [#allocation4], 0
    // Predicated region
    $region2: #{tpu_custom_call.1} parent=1 // pred_check
      _
    $region3: #{tpu_custom_call.1} parent=1 // pred_check_branch
      %18 = sbr.rel (0) target = $region5
    $region4: #{tpu_custom_call.1} parent=1 // pred_region
      %s20 = ssub.s32 16, 16
      %21 = vsyncadd [#allocation4], %s20
      %s23 = sshll.u32 %s0, 4
      %s24 = int_to_ptr.vmem [resolvable:$true] %s23
      %26 = dma.vmem_to_smem %s24, 16, [#allocation3], [#allocation4]
    $region5: #{tpu_custom_call.1} parent=1 // pred_fallthru
      _
    // Predicated region
    $region6: #{tpu_custom_call.1} parent=1 // pred_check
      _
    $region7: #{tpu_custom_call.1} parent=1 // pred_check_branch
      %28 = sbr.rel (0) target = $region9
    $region8: #{tpu_custom_call.1} parent=1 // pred_region
      _
    $region9: #{tpu_custom_call.1} parent=1 // pred_fallthru
      _
    // Predicated region
    $region10: #{tpu_custom_call.1} parent=1 // pred_check
      _
    $region11: #{tpu_custom_call.1} parent=1 // pred_check_branch
      %30 = sbr.rel (0) target = $region13
    $region12: #{tpu_custom_call.1} parent=1 // pred_region
      _
    $region13: #{tpu_custom_call.1} parent=1 // pred_fallthru
      _
    // Predicated region
    $region14: #{tpu_custom_call.1} parent=1 // pred_check
      _
    $region15: #{tpu_custom_call.1} parent=1 // pred_check_branch
      %32 = sbr.rel (0) target = $region17
    $region16: #{tpu_custom_call.1} parent=1 // pred_region
      _
    $region17: #{tpu_custom_call.1} parent=1 // pred_fallthru
      _
    // Predicated region
    $region18: #{tpu_custom_call.1} parent=1 // pred_check
      _
    $region19: #{tpu_custom_call.1} parent=1 // pred_check_branch
      %34 = sbr.rel (0) target = $region21
    $region20: #{tpu_custom_call.1} parent=1 // pred_region
      _
    $region21: #{tpu_custom_call.1} parent=1 // pred_fallthru
      _
    // Predicated region
    $region22: #{tpu_custom_call.1} parent=1 // pred_check
      _
    $region23: #{tpu_custom_call.1} parent=1 // pred_check_branch
      %36 = sbr.rel (0) target = $region25
    $region24: #{tpu_custom_call.1} parent=1 // pred_region
      _
    $region25: #{tpu_custom_call.1} parent=1 // pred_fallthru
      _
    // Predicated region
    $region26: #{tpu_custom_call.1} parent=1 // pred_check
      _
    $region27: #{tpu_custom_call.1} parent=1 // pred_check_branch
      %38 = sbr.rel (0) target = $region29
    $region28: #{tpu_custom_call.1} parent=1 // pred_region
      _
    $region29: #{tpu_custom_call.1} parent=1 // pred_fallthru
      _
    // Predicated region
    $region30: #{tpu_custom_call.1} parent=1 // pred_check
      _
    $region31: #{tpu_custom_call.1} parent=1 // pred_check_branch
      %40 = sbr.rel (0) target = $region33
    $region32: #{tpu_custom_call.1} parent=1 // pred_region
      _
    $region33: #{tpu_custom_call.1} parent=1 // pred_fallthru
      _
    // Predicated region
    $region34: #{tpu_custom_call.1} parent=1 // pred_check
      _
    $region35: #{tpu_custom_call.1} parent=1 // pred_check_branch
      %42 = sbr.rel (0) target = $region37
    $region36: #{tpu_custom_call.1} parent=1 // pred_region
      _
    $region37: #{tpu_custom_call.1} parent=1 // pred_fallthru
      _
    // Predicated region
    $region38: #{tpu_custom_call.1} parent=1 // pred_check
      _
    $region39: #{tpu_custom_call.1} parent=1 // pred_check_branch
      %44 = sbr.rel (0) target = $region41
    $region40: #{tpu_custom_call.1} parent=1 // pred_region
      _
    $region41: #{tpu_custom_call.1} parent=1 // pred_fallthru
      _
    // Predicated region
    $region42: #{tpu_custom_call.1} parent=1 // pred_check
      _
    $region43: #{tpu_custom_call.1} parent=1 // pred_check_branch
      %46 = sbr.rel (0) target = $region45
    $region44: #{tpu_custom_call.1} parent=1 // pred_region
      _
    $region45: #{tpu_custom_call.1} parent=1 // pred_fallthru
      _
    // Predicated region
    $region46: #{tpu_custom_call.1} parent=1 // pred_check
      _
    $region47: #{tpu_custom_call.1} parent=1 // pred_check_branch
      %48 = sbr.rel (0) target = $region49
    $region48: #{tpu_custom_call.1} parent=1 // pred_region
      %49 = dma.done [#allocation4], 16
    $region49: #{tpu_custom_call.1} parent=1 // pred_fallthru
      _
    %50 = sfence
    %v51 = vld [vmem:[%s3] sm:$0xff]
    %v52 = vld [vmem:[%s4] sm:$0xff]
    %v53 = vld [vmem:[%s4 + $0x8] sm:$0xff]
    %v54 = vld [vmem:[%s4 + $0x10] sm:$0xff]
    %v55 = vld [vmem:[%s4 + $0x18] sm:$0xff]
    %v56 = vld [vmem:[%s5] sm:$0x1]
    %v57 = vld [vmem:[%s6] sm:$0xff]
    %v58 = vld [vmem:[%s7] sm:$0xff]
    %v59 = vld [vmem:[%s7 + $0x8] sm:$0xff]
    %v60 = vld [vmem:[%s7 + $0x10] sm:$0xff]
    %v61 = vld [vmem:[%s7 + $0x18] sm:$0xff]
    %v62 = vld [vmem:[%s8] sm:$0x1]
    %v63 = vld [vmem:[%s9] sm:$0xff]
    %v64 = vld [vmem:[%s9 + $0x8] sm:$0xff]
    %v65 = vld [vmem:[%s9 + $0x10] sm:$0xff]
    %v66 = vld [vmem:[%s9 + $0x18] sm:$0xff]
    %v67 = vld [vmem:[%s10] sm:$0x1]
    %v68 = vld [vmem:[%s1] sm:$0xff]
    %v69 = vld [vmem:[%s1 + $0x8] sm:$0xff]
    %v70 = vld [vmem:[%s1 + $0x10] sm:$0xff]
    %v71 = vld [vmem:[%s1 + $0x18] sm:$0xff]
    %v72 = vld [vmem:[%s1 + $0x20] sm:$0xff]
    %v73 = vld [vmem:[%s1 + $0x28] sm:$0xff]
    %v74 = vld [vmem:[%s1 + $0x30] sm:$0xff]
    %v75 = vld [vmem:[%s1 + $0x38] sm:$0xff]
    %v77 = vlaneseq
    %v78 = vshrl.u32 %v77, 7
    %v79 = vsub.s32 0, %v78
    %v80 = vrot.slane %v56, %v79
    %vm82 = vcmask 64512
    %v84 = vsel %vm82, %v68, 0
    %v87 = vsel %vm82, %v69, 0
    %v90 = vsel %vm82, %v70, 0
    %v93 = vsel %vm82, %v71, 0
    %v96 = vsel %vm82, %v72, 0
    %v99 = vsel %vm82, %v73, 0
    %v102 = vsel %vm82, %v74, 0
    %v105 = vsel %vm82, %v75, 0
    %107 = vmatprep.subr.mxu0 0.0
    %108 = vmatpush1.msra.mxu0 %v51
    %109 = vmatprep.subr.mxu0 0.0
    %110 = vmatpush1.msra.mxu0 0.0
    %111 = vmatprep.subr.mxu0 0.0
    %112 = vmatpush1.msra.mxu0 0.0
    %113 = vmatprep.subr.mxu0 0.0
    %114 = vmatpush1.msra.mxu0 0.0
    %115 = vmatprep.subr.mxu0 0.0
    %116 = vmatpush1.msra.mxu0 0.0
    %117 = vmatprep.subr.mxu0 0.0
    %118 = vmatpush1.msra.mxu0 0.0
    %119 = vmatprep.subr.mxu0 0.0
    %120 = vmatpush1.msra.mxu0 0.0
    %121 = vmatprep.subr.mxu0 0.0
    %122 = vmatpush1.msra.mxu0 0.0
    %123 = vmatprep.subr.mxu0 0.0
    %124 = vmatpush1.msra.mxu0 0.0
    %125 = vmatprep.subr.mxu0 0.0
    %126 = vmatpush1.msra.mxu0 0.0
    %127 = vmatprep.subr.mxu0 0.0
    %128 = vmatpush1.msra.mxu0 0.0
    %129 = vmatprep.subr.mxu0 0.0
    %130 = vmatpush1.msra.mxu0 0.0
    %131 = vmatprep.subr.mxu0 0.0
    %132 = vmatpush1.msra.mxu0 0.0
    %133 = vmatprep.subr.mxu0 0.0
    %134 = vmatpush1.msra.mxu0 0.0
    %135 = vmatprep.subr.mxu0 0.0
    %136 = vmatpush1.msra.mxu0 0.0
    %137 = vmatprep.subr.mxu0 0.0
    %138 = vmatpush1.msra.mxu0 0.0
    %139 = vmatprep.subr.mxu0 0.0
    %140 = vmatpush1.msra.mxu0 0.0
    %141 = vmatprep.subr.mxu0 0.0
    %142 = vmatpush1.msra.mxu0 0.0
    %143 = vmatprep.subr.mxu0 0.0
    %144 = vmatpush1.msra.mxu0 0.0
    %145 = vmatprep.subr.mxu0 0.0
    %146 = vmatpush1.msra.mxu0 0.0
    %147 = vmatprep.subr.mxu0 0.0
    %148 = vmatpush1.msra.mxu0 0.0
    %149 = vmatprep.subr.mxu0 0.0
    %150 = vmatpush1.msra.mxu0 0.0
    %151 = vmatprep.subr.mxu0 0.0
    %152 = vmatpush1.msra.mxu0 0.0
    %153 = vmatprep.subr.mxu0 0.0
    %154 = vmatpush1.msra.mxu0 0.0
    %155 = vmatprep.subr.mxu0 0.0
    %156 = vmatpush1.msra.mxu0 0.0
    %157 = vmatprep.subr.mxu0 0.0
    %158 = vmatpush1.msra.mxu0 0.0
    %159 = vmatprep.subr.mxu0 0.0
    %160 = vmatpush1.msra.mxu0 0.0
    %161 = vmatprep.subr.mxu0 0.0
    %162 = vmatpush1.msra.mxu0 0.0
    %163 = vmatprep.subr.mxu0 0.0
    %164 = vmatpush1.msra.mxu0 0.0
    %165 = vmatprep.subr.mxu0 0.0
    %166 = vmatpush1.msra.mxu0 0.0
    %167 = vmatprep.subr.mxu0 0.0
    %168 = vmatpush1.msra.mxu0 0.0
    %169 = vmatprep.subr.mxu0 0.0
    %170 = vmatpush1.msra.mxu0 0.0
    %171 = vmatprep.mubr.f32.mxu0 0.0
    %172 = vmatmul.mubr.f32.gmra.mrb[0].mxu0 %v84
    %v173 = vpop.f32.mrb[0].mxu0
    %v174 = vadd.f32 %v80, %v173
    %v175 = vpop.f32.mrb[0].mxu0
    %176 = vmatprep.mubr.f32.mxu0 0.0
    %177 = vmatmul.mubr.f32.gmra.mrb[0].mxu0 %v87
    %v178 = vpop.f32.mrb[0].mxu0
    %v179 = vadd.f32 %v80, %v178
    %v180 = vpop.f32.mrb[0].mxu0
    %181 = vmatprep.mubr.f32.mxu0 0.0
    %182 = vmatmul.mubr.f32.gmra.mrb[0].mxu0 %v90
    %v183 = vpop.f32.mrb[0].mxu0
    %v184 = vadd.f32 %v80, %v183
    %v185 = vpop.f32.mrb[0].mxu0
    %186 = vmatprep.mubr.f32.mxu0 0.0
    %187 = vmatmul.mubr.f32.gmra.mrb[0].mxu0 %v93
    %v188 = vpop.f32.mrb[0].mxu0
    %v189 = vadd.f32 %v80, %v188
    %v190 = vpop.f32.mrb[0].mxu0
    %191 = vmatprep.mubr.f32.mxu0 0.0
    %192 = vmatmul.mubr.f32.gmra.mrb[0].mxu0 %v96
    %v193 = vpop.f32.mrb[0].mxu0
    %v194 = vadd.f32 %v80, %v193
    %v195 = vpop.f32.mrb[0].mxu0
    %196 = vmatprep.mubr.f32.mxu0 0.0
    %197 = vmatmul.mubr.f32.gmra.mrb[0].mxu0 %v99
    %v198 = vpop.f32.mrb[0].mxu0
    %v199 = vadd.f32 %v80, %v198
    %v200 = vpop.f32.mrb[0].mxu0
    %201 = vmatprep.mubr.f32.mxu0 0.0
    %202 = vmatmul.mubr.f32.gmra.mrb[0].mxu0 %v102
    %v203 = vpop.f32.mrb[0].mxu0
    %v204 = vadd.f32 %v80, %v203
    %v205 = vpop.f32.mrb[0].mxu0
    %206 = vmatprep.mubr.f32.mxu0 0.0
    %207 = vmatmul.mubr.f32.gmra.mrb[0].mxu0 %v105
    %v208 = vpop.f32.mrb[0].mxu0
    %v209 = vadd.f32 %v80, %v208
    %v210 = vpop.f32.mrb[0].mxu0
    %211 = vdwg.mxu0
    %v212 = vld [vmem:[%s2] sm:$0xff]
    %v213 = vld [vmem:[%s2 + $0x8] sm:$0xff]
    %v214 = vld [vmem:[%s2 + $0x10] sm:$0xff]
    %v215 = vld [vmem:[%s2 + $0x18] sm:$0xff]
    %v217 = vsel %vm82, %v212, 0
    %v220 = vsel %vm82, %v213, 0
    %v223 = vsel %vm82, %v214, 0
    %v226 = vsel %vm82, %v215, 0
    %228 = vmatprep.subr.mxu0 0.0
    %229 = vmatpush1.msra.mxu0 %v57
    %230 = vmatprep.subr.mxu0 0.0
    %231 = vmatpush1.msra.mxu0 0.0
    %232 = vmatprep.subr.mxu0 0.0
    %233 = vmatpush1.msra.mxu0 0.0
    %234 = vmatprep.subr.mxu0 0.0
    %235 = vmatpush1.msra.mxu0 0.0
    %236 = vmatprep.subr.mxu0 0.0
    %237 = vmatpush1.msra.mxu0 0.0
    %238 = vmatprep.subr.mxu0 0.0
    %239 = vmatpush1.msra.mxu0 0.0
    %240 = vmatprep.subr.mxu0 0.0
    %241 = vmatpush1.msra.mxu0 0.0
    %242 = vmatprep.subr.mxu0 0.0
    %243 = vmatpush1.msra.mxu0 0.0
    %244 = vmatprep.subr.mxu0 0.0
    %245 = vmatpush1.msra.mxu0 0.0
    %246 = vmatprep.subr.mxu0 0.0
    %247 = vmatpush1.msra.mxu0 0.0
    %248 = vmatprep.subr.mxu0 0.0
    %249 = vmatpush1.msra.mxu0 0.0
    %250 = vmatprep.subr.mxu0 0.0
    %251 = vmatpush1.msra.mxu0 0.0
    %252 = vmatprep.subr.mxu0 0.0
    %253 = vmatpush1.msra.mxu0 0.0
    %254 = vmatprep.subr.mxu0 0.0
    %255 = vmatpush1.msra.mxu0 0.0
    %256 = vmatprep.subr.mxu0 0.0
    %257 = vmatpush1.msra.mxu0 0.0
    %258 = vmatprep.subr.mxu0 0.0
    %259 = vmatpush1.msra.mxu0 0.0
    %260 = vmatprep.subr.mxu0 0.0
    %261 = vmatpush1.msra.mxu0 0.0
    %262 = vmatprep.subr.mxu0 0.0
    %263 = vmatpush1.msra.mxu0 0.0
    %264 = vmatprep.subr.mxu0 0.0
    %265 = vmatpush1.msra.mxu0 0.0
    %266 = vmatprep.subr.mxu0 0.0
    %267 = vmatpush1.msra.mxu0 0.0
    %268 = vmatprep.subr.mxu0 0.0
    %269 = vmatpush1.msra.mxu0 0.0
    %270 = vmatprep.subr.mxu0 0.0
    %271 = vmatpush1.msra.mxu0 0.0
    %272 = vmatprep.subr.mxu0 0.0
    %273 = vmatpush1.msra.mxu0 0.0
    %274 = vmatprep.subr.mxu0 0.0
    %275 = vmatpush1.msra.mxu0 0.0
    %276 = vmatprep.subr.mxu0 0.0
    %277 = vmatpush1.msra.mxu0 0.0
    %278 = vmatprep.subr.mxu0 0.0
    %279 = vmatpush1.msra.mxu0 0.0
    %280 = vmatprep.subr.mxu0 0.0
    %281 = vmatpush1.msra.mxu0 0.0
    %282 = vmatprep.subr.mxu0 0.0
    %283 = vmatpush1.msra.mxu0 0.0
    %284 = vmatprep.subr.mxu0 0.0
    %285 = vmatpush1.msra.mxu0 0.0
    %286 = vmatprep.subr.mxu0 0.0
    %287 = vmatpush1.msra.mxu0 0.0
    %288 = vmatprep.subr.mxu0 0.0
    %289 = vmatpush1.msra.mxu0 0.0
    %290 = vmatprep.subr.mxu0 0.0
    %291 = vmatpush1.msra.mxu0 0.0
    %292 = vmatprep.mubr.f32.mxu0 0.0
    %293 = vmatmul.mubr.f32.gmra.mrb[0].mxu0 %v217
    %v294 = vpop.f32.mrb[0].mxu0
    %v295 = vadd.f32 0.0, %v294
    %v296 = vpop.f32.mrb[0].mxu0
    %297 = vmatprep.mubr.f32.mxu0 0.0
    %298 = vmatmul.mubr.f32.gmra.mrb[0].mxu0 %v220
    %v299 = vpop.f32.mrb[0].mxu0
    %v300 = vadd.f32 0.0, %v299
    %v301 = vpop.f32.mrb[0].mxu0
    %302 = vmatprep.mubr.f32.mxu0 0.0
    %303 = vmatmul.mubr.f32.gmra.mrb[0].mxu0 %v223
    %v304 = vpop.f32.mrb[0].mxu0
    %v305 = vadd.f32 0.0, %v304
    %v306 = vpop.f32.mrb[0].mxu0
    %307 = vmatprep.mubr.f32.mxu0 0.0
    %308 = vmatmul.mubr.f32.gmra.mrb[0].mxu0 %v226
    %v309 = vpop.f32.mrb[0].mxu0
    %v310 = vpop.f32.mrb[0].mxu0
    %311 = vdwg.mxu0
    %v313 = vsel %vm82, %v63, 0
    %v316 = vsel %vm82, %v64, 0
    %v319 = vsel %vm82, %v65, 0
    %v322 = vsel %vm82, %v66, 0
    %324 = vmatprep.subr.mxu0 0.0
    %325 = vmatpush1.msra.mxu0 %v57
    %326 = vmatprep.subr.mxu0 0.0
    %327 = vmatpush1.msra.mxu0 0.0
    %328 = vmatprep.subr.mxu0 0.0
    %329 = vmatpush1.msra.mxu0 0.0
    %330 = vmatprep.subr.mxu0 0.0
    %331 = vmatpush1.msra.mxu0 0.0
    %332 = vmatprep.subr.mxu0 0.0
    %333 = vmatpush1.msra.mxu0 0.0
    %334 = vmatprep.subr.mxu0 0.0
    %335 = vmatpush1.msra.mxu0 0.0
    %336 = vmatprep.subr.mxu0 0.0
    %337 = vmatpush1.msra.mxu0 0.0
    %338 = vmatprep.subr.mxu0 0.0
    %339 = vmatpush1.msra.mxu0 0.0
    %340 = vmatprep.subr.mxu0 0.0
    %341 = vmatpush1.msra.mxu0 0.0
    %342 = vmatprep.subr.mxu0 0.0
    %343 = vmatpush1.msra.mxu0 0.0
    %344 = vmatprep.subr.mxu0 0.0
    %345 = vmatpush1.msra.mxu0 0.0
    %346 = vmatprep.subr.mxu0 0.0
    %347 = vmatpush1.msra.mxu0 0.0
    %348 = vmatprep.subr.mxu0 0.0
    %349 = vmatpush1.msra.mxu0 0.0
    %350 = vmatprep.subr.mxu0 0.0
    %351 = vmatpush1.msra.mxu0 0.0
    %352 = vmatprep.subr.mxu0 0.0
    %353 = vmatpush1.msra.mxu0 0.0
    %354 = vmatprep.subr.mxu0 0.0
    %355 = vmatpush1.msra.mxu0 0.0
    %356 = vmatprep.subr.mxu0 0.0
    %357 = vmatpush1.msra.mxu0 0.0
    %358 = vmatprep.subr.mxu0 0.0
    %359 = vmatpush1.msra.mxu0 0.0
    %360 = vmatprep.subr.mxu0 0.0
    %361 = vmatpush1.msra.mxu0 0.0
    %362 = vmatprep.subr.mxu0 0.0
    %363 = vmatpush1.msra.mxu0 0.0
    %364 = vmatprep.subr.mxu0 0.0
    %365 = vmatpush1.msra.mxu0 0.0
    %366 = vmatprep.subr.mxu0 0.0
    %367 = vmatpush1.msra.mxu0 0.0
    %368 = vmatprep.subr.mxu0 0.0
    %369 = vmatpush1.msra.mxu0 0.0
    %370 = vmatprep.subr.mxu0 0.0
    %371 = vmatpush1.msra.mxu0 0.0
    %372 = vmatprep.subr.mxu0 0.0
    %373 = vmatpush1.msra.mxu0 0.0
    %374 = vmatprep.subr.mxu0 0.0
    %375 = vmatpush1.msra.mxu0 0.0
    %376 = vmatprep.subr.mxu0 0.0
    %377 = vmatpush1.msra.mxu0 0.0
    %378 = vmatprep.subr.mxu0 0.0
    %379 = vmatpush1.msra.mxu0 0.0
    %380 = vmatprep.subr.mxu0 0.0
    %381 = vmatpush1.msra.mxu0 0.0
    %382 = vmatprep.subr.mxu0 0.0
    %383 = vmatpush1.msra.mxu0 0.0
    %384 = vmatprep.subr.mxu0 0.0
    %385 = vmatpush1.msra.mxu0 0.0
    %386 = vmatprep.subr.mxu0 0.0
    %387 = vmatpush1.msra.mxu0 0.0
    %388 = vmatprep.mubr.f32.mxu0 0.0
    %389 = vmatmul.mubr.f32.gmra.mrb[0].mxu0 %v313
    %v390 = vpop.f32.mrb[0].mxu0
    %v391 = vadd.f32 0.0, %v390
    %v392 = vpop.f32.mrb[0].mxu0
    %393 = vmatprep.mubr.f32.mxu0 0.0
    %394 = vmatmul.mubr.f32.gmra.mrb[0].mxu0 %v316
    %v395 = vpop.f32.mrb[0].mxu0
    %v396 = vadd.f32 0.0, %v395
    %v397 = vpop.f32.mrb[0].mxu0
    %398 = vmatprep.mubr.f32.mxu0 0.0
    %399 = vmatmul.mubr.f32.gmra.mrb[0].mxu0 %v319
    %v400 = vpop.f32.mrb[0].mxu0
    %v401 = vadd.f32 0.0, %v400
    %v402 = vpop.f32.mrb[0].mxu0
    %403 = vmatprep.mubr.f32.mxu0 0.0
    %404 = vmatmul.mubr.f32.gmra.mrb[0].mxu0 %v322
    %v405 = vpop.f32.mrb[0].mxu0
    %v406 = vadd.f32 0.0, %v405
    %v407 = vpop.f32.mrb[0].mxu0
    %408 = vdwg.mxu0
    %v410 = vsel %vm82, %v67, 0
    %412 = vmatprep.subr.mxu0 0.0
    %413 = vmatpush1.msra.mxu0 %v57
    %414 = vmatprep.subr.mxu0 0.0
    %415 = vmatpush1.msra.mxu0 0.0
    %416 = vmatprep.subr.mxu0 0.0
    %417 = vmatpush1.msra.mxu0 0.0
    %418 = vmatprep.subr.mxu0 0.0
    %419 = vmatpush1.msra.mxu0 0.0
    %420 = vmatprep.subr.mxu0 0.0
    %421 = vmatpush1.msra.mxu0 0.0
    %422 = vmatprep.subr.mxu0 0.0
    %423 = vmatpush1.msra.mxu0 0.0
    %424 = vmatprep.subr.mxu0 0.0
    %425 = vmatpush1.msra.mxu0 0.0
    %426 = vmatprep.subr.mxu0 0.0
    %427 = vmatpush1.msra.mxu0 0.0
    %428 = vmatprep.subr.mxu0 0.0
    %429 = vmatpush1.msra.mxu0 0.0
    %430 = vmatprep.subr.mxu0 0.0
    %431 = vmatpush1.msra.mxu0 0.0
    %432 = vmatprep.subr.mxu0 0.0
    %433 = vmatpush1.msra.mxu0 0.0
    %434 = vmatprep.subr.mxu0 0.0
    %435 = vmatpush1.msra.mxu0 0.0
    %436 = vmatprep.subr.mxu0 0.0
    %437 = vmatpush1.msra.mxu0 0.0
    %438 = vmatprep.subr.mxu0 0.0
    %439 = vmatpush1.msra.mxu0 0.0
    %440 = vmatprep.subr.mxu0 0.0
    %441 = vmatpush1.msra.mxu0 0.0
    %442 = vmatprep.subr.mxu0 0.0
    %443 = vmatpush1.msra.mxu0 0.0
    %444 = vmatprep.subr.mxu0 0.0
    %445 = vmatpush1.msra.mxu0 0.0
    %446 = vmatprep.subr.mxu0 0.0
    %447 = vmatpush1.msra.mxu0 0.0
    %448 = vmatprep.subr.mxu0 0.0
    %449 = vmatpush1.msra.mxu0 0.0
    %450 = vmatprep.subr.mxu0 0.0
    %451 = vmatpush1.msra.mxu0 0.0
    %452 = vmatprep.subr.mxu0 0.0
    %453 = vmatpush1.msra.mxu0 0.0
    %454 = vmatprep.subr.mxu0 0.0
    %455 = vmatpush1.msra.mxu0 0.0
    %456 = vmatprep.subr.mxu0 0.0
    %457 = vmatpush1.msra.mxu0 0.0
    %458 = vmatprep.subr.mxu0 0.0
    %459 = vmatpush1.msra.mxu0 0.0
    %460 = vmatprep.subr.mxu0 0.0
    %461 = vmatpush1.msra.mxu0 0.0
    %462 = vmatprep.subr.mxu0 0.0
    %463 = vmatpush1.msra.mxu0 0.0
    %464 = vmatprep.subr.mxu0 0.0
    %465 = vmatpush1.msra.mxu0 0.0
    %466 = vmatprep.subr.mxu0 0.0
    %467 = vmatpush1.msra.mxu0 0.0
    %468 = vmatprep.subr.mxu0 0.0
    %469 = vmatpush1.msra.mxu0 0.0
    %470 = vmatprep.subr.mxu0 0.0
    %471 = vmatpush1.msra.mxu0 0.0
    %472 = vmatprep.subr.mxu0 0.0
    %473 = vmatpush1.msra.mxu0 0.0
    %474 = vmatprep.subr.mxu0 0.0
    %475 = vmatpush1.msra.mxu0 0.0
    %476 = vmatprep.mubr.f32.mxu0 0.0
    %477 = vmatmul.mubr.f32.gmra.mrb[0].mxu0 %v410
    %v478 = vpop.f32.mrb[0].mxu0
    %v479 = vadd.f32 0.0, %v478
    %v480 = vpop.f32.mrb[0].mxu0
    %481 = vdwg.mxu0
    %v483 = vlaneseq
    %v484 = vshrl.u32 %v483, 7
    %v485 = vsub.s32 0, %v484
    %v486 = vrot.slane %v62, %v485
    %v488 = vlaneseq
    %v489 = vshrl.u32 %v488, 7
    %v490 = vsub.s32 0, %v489
    %v491 = vrot.slane %v479, %v490
    %492 = vmatprep.subr.mxu0 0.0
    %493 = vmatpush1.msra.mxu0 %v57
    %494 = vmatprep.subr.mxu0 0.0
    %495 = vmatpush1.msra.mxu0 0.0
    %496 = vmatprep.subr.mxu0 0.0
    %497 = vmatpush1.msra.mxu0 0.0
    %498 = vmatprep.subr.mxu0 0.0
    %499 = vmatpush1.msra.mxu0 0.0
    %500 = vmatprep.subr.mxu0 0.0
    %501 = vmatpush1.msra.mxu0 0.0
    %502 = vmatprep.subr.mxu0 0.0
    %503 = vmatpush1.msra.mxu0 0.0
    %504 = vmatprep.subr.mxu0 0.0
    %505 = vmatpush1.msra.mxu0 0.0
    %506 = vmatprep.subr.mxu0 0.0
    %507 = vmatpush1.msra.mxu0 0.0
    %508 = vmatprep.subr.mxu0 0.0
    %509 = vmatpush1.msra.mxu0 0.0
    %510 = vmatprep.subr.mxu0 0.0
    %511 = vmatpush1.msra.mxu0 0.0
    %512 = vmatprep.subr.mxu0 0.0
    %513 = vmatpush1.msra.mxu0 0.0
    %514 = vmatprep.subr.mxu0 0.0
    %515 = vmatpush1.msra.mxu0 0.0
    %516 = vmatprep.subr.mxu0 0.0
    %517 = vmatpush1.msra.mxu0 0.0
    %518 = vmatprep.subr.mxu0 0.0
    %519 = vmatpush1.msra.mxu0 0.0
    %520 = vmatprep.subr.mxu0 0.0
    %521 = vmatpush1.msra.mxu0 0.0
    %522 = vmatprep.subr.mxu0 0.0
    %523 = vmatpush1.msra.mxu0 0.0
    %524 = vmatprep.subr.mxu0 0.0
    %525 = vmatpush1.msra.mxu0 0.0
    %526 = vmatprep.subr.mxu0 0.0
    %527 = vmatpush1.msra.mxu0 0.0
    %528 = vmatprep.subr.mxu0 0.0
    %529 = vmatpush1.msra.mxu0 0.0
    %530 = vmatprep.subr.mxu0 0.0
    %531 = vmatpush1.msra.mxu0 0.0
    %532 = vmatprep.subr.mxu0 0.0
    %533 = vmatpush1.msra.mxu0 0.0
    %534 = vmatprep.subr.mxu0 0.0
    %535 = vmatpush1.msra.mxu0 0.0
    %536 = vmatprep.subr.mxu0 0.0
    %537 = vmatpush1.msra.mxu0 0.0
    %538 = vmatprep.subr.mxu0 0.0
    %539 = vmatpush1.msra.mxu0 0.0
    %540 = vmatprep.subr.mxu0 0.0
    %541 = vmatpush1.msra.mxu0 0.0
    %542 = vmatprep.subr.mxu0 0.0
    %543 = vmatpush1.msra.mxu0 0.0
    %544 = vmatprep.subr.mxu0 0.0
    %545 = vmatpush1.msra.mxu0 0.0
    %546 = vmatprep.subr.mxu0 0.0
    %547 = vmatpush1.msra.mxu0 0.0
    %548 = vmatprep.subr.mxu0 0.0
    %549 = vmatpush1.msra.mxu0 0.0
    %550 = vmatprep.subr.mxu0 0.0
    %551 = vmatpush1.msra.mxu0 0.0
    %552 = vmatprep.subr.mxu0 0.0
    %553 = vmatpush1.msra.mxu0 0.0
    %554 = vmatprep.subr.mxu0 0.0
    %555 = vmatpush1.msra.mxu0 0.0
    %556 = vmatprep.mubr.f32.mxu0 0.0
    %557 = vmatmul.mubr.f32.gmra.mrb[0].mxu0 %v105
    %v558 = vpop.f32.mrb[0].mxu0
    %v559 = vadd.f32 %v486, %v558
    %v560 = vpop.f32.mrb[0].mxu0
    %561 = vdwg.mxu0
    %s562 = sld [smem:[#allocation3]]
    %s563 = scvt.s32.f32 %s562
    %s564 = ssub.f32 1.0, %s563
    %v565 = vstv %s564
    %v566 = vmul.f32 %v565, %v391
    %v567 = vmul.f32 %v565, %v396
    %v568 = vmul.f32 %v565, %v401
    %v569 = vmul.f32 %v565, %v406
    %v570 = vadd.f32 %v58, %v566
    %v571 = vadd.f32 %v59, %v567
    %v572 = vadd.f32 %v60, %v568
    %v573 = vadd.f32 %v61, %v569
    %v574 = vstv %s563
    %v575 = vmul.f32 %v574, %v295
    %v576 = vmul.f32 %v565, %v491
    %v577 = vadd.f32 %v575, %v576
    %v578 = vadd.f32 %v577, %v486
    %s579 = sld [smem:[#allocation3 + $0x1]]
    %s580 = scvt.s32.f32 %s579
    %s581 = ssub.f32 1.0, %s580
    %v582 = vstv %s581
    %v583 = vmul.f32 %v582, %v391
    %v584 = vmul.f32 %v582, %v396
    %v585 = vmul.f32 %v582, %v401
    %v586 = vmul.f32 %v582, %v406
    %v587 = vadd.f32 %v58, %v583
    %v588 = vadd.f32 %v59, %v584
    %v589 = vadd.f32 %v60, %v585
    %v590 = vadd.f32 %v61, %v586
    %v591 = vstv %s580
    %v592 = vmul.f32 %v591, %v300
    %v593 = vmul.f32 %v582, %v491
    %v594 = vadd.f32 %v592, %v593
    %v595 = vadd.f32 %v594, %v486
    %s596 = sld [smem:[#allocation3 + $0x2]]
    %s597 = scvt.s32.f32 %s596
    %s598 = ssub.f32 1.0, %s597
    %v599 = vstv %s598
    %v600 = vmul.f32 %v599, %v391
    %v601 = vmul.f32 %v599, %v396
    %v602 = vmul.f32 %v599, %v401
    %v603 = vmul.f32 %v599, %v406
    %v604 = vadd.f32 %v58, %v600
    %v605 = vadd.f32 %v59, %v601
    %v606 = vadd.f32 %v60, %v602
    %v607 = vadd.f32 %v61, %v603
    %v608 = vstv %s597
    %v609 = vmul.f32 %v608, %v305
    %v610 = vmul.f32 %v599, %v491
    %v611 = vadd.f32 %v609, %v610
    %v612 = vadd.f32 %v611, %v486
    %vm613 = vcmask 261120
    %v615 = vsel %vm613, 0.0, 0
    %617 = vmatprep.subr.mxu0 0.0
    %618 = vmatpush1.msra.mxu0 %v52
    %619 = vmatprep.subr.mxu0 0.0
    %620 = vmatpush1.msra.mxu0 %v53
    %621 = vmatprep.subr.mxu0 0.0
    %622 = vmatpush1.msra.mxu0 %v54
    %623 = vmatprep.subr.mxu0 0.0
    %624 = vmatpush1.msra.mxu0 %v55
    %625 = vmatprep.subr.mxu0 0.0
    %626 = vmatpush1.msra.mxu0 0.0
    %627 = vmatprep.subr.mxu0 0.0
    %628 = vmatpush1.msra.mxu0 0.0
    %629 = vmatprep.subr.mxu0 0.0
    %630 = vmatpush1.msra.mxu0 0.0
    %631 = vmatprep.subr.mxu0 0.0
    %632 = vmatpush1.msra.mxu0 0.0
    %633 = vmatprep.subr.mxu0 0.0
    %634 = vmatpush1.msra.mxu0 0.0
    %635 = vmatprep.subr.mxu0 0.0
    %636 = vmatpush1.msra.mxu0 0.0
    %637 = vmatprep.subr.mxu0 0.0
    %638 = vmatpush1.msra.mxu0 0.0
    %639 = vmatprep.subr.mxu0 0.0
    %640 = vmatpush1.msra.mxu0 0.0
    %641 = vmatprep.subr.mxu0 0.0
    %642 = vmatpush1.msra.mxu0 0.0
    %643 = vmatprep.subr.mxu0 0.0
    %644 = vmatpush1.msra.mxu0 0.0
    %645 = vmatprep.subr.mxu0 0.0
    %646 = vmatpush1.msra.mxu0 0.0
    %647 = vmatprep.subr.mxu0 0.0
    %648 = vmatpush1.msra.mxu0 0.0
    %649 = vmatprep.subr.mxu0 0.0
    %650 = vmatpush1.msra.mxu0 0.0
    %651 = vmatprep.subr.mxu0 0.0
    %652 = vmatpush1.msra.mxu0 0.0
    %653 = vmatprep.subr.mxu0 0.0
    %654 = vmatpush1.msra.mxu0 0.0
    %655 = vmatprep.subr.mxu0 0.0
    %656 = vmatpush1.msra.mxu0 0.0
    %657 = vmatprep.subr.mxu0 0.0
    %658 = vmatpush1.msra.mxu0 0.0
    %659 = vmatprep.subr.mxu0 0.0
    %660 = vmatpush1.msra.mxu0 0.0
    %661 = vmatprep.subr.mxu0 0.0
    %662 = vmatpush1.msra.mxu0 0.0
    %663 = vmatprep.subr.mxu0 0.0
    %664 = vmatpush1.msra.mxu0 0.0
    %665 = vmatprep.subr.mxu0 0.0
    %666 = vmatpush1.msra.mxu0 0.0
    %667 = vmatprep.subr.mxu0 0.0
    %668 = vmatpush1.msra.mxu0 0.0
    %669 = vmatprep.subr.mxu0 0.0
    %670 = vmatpush1.msra.mxu0 0.0
    %671 = vmatprep.subr.mxu0 0.0
    %672 = vmatpush1.msra.mxu0 0.0
    %673 = vmatprep.subr.mxu0 0.0
    %674 = vmatpush1.msra.mxu0 0.0
    %675 = vmatprep.subr.mxu0 0.0
    %676 = vmatpush1.msra.mxu0 0.0
    %677 = vmatprep.subr.mxu0 0.0
    %678 = vmatpush1.msra.mxu0 0.0
    %679 = vmatprep.subr.mxu0 0.0
    %680 = vmatpush1.msra.mxu0 0.0
    %681 = vmatprep.mubr.f32.mxu0 0.0
    %682 = vmatmul.mubr.f32.gmra.mrb[0].mxu0 %v615
    %v683 = vpop.f32.mrb[0].mxu0
    %v684 = vadd.f32 0.0, %v683
    %v685 = vpop.f32.mrb[0].mxu0
    %686 = vdwg.mxu0
    %v687 = vadd.f32 %v174, %v684
    %v688 = vxor.u32 %v687, 2147483648
    %v689 = vmul.f32 %v688, 1.442695
    %v690 = vpow.pop %v689
    %v691 = vadd.f32 %v690, 1.0
    %v692 = vrcp.pop %v691
    %v693 = vmul.f32 1.0, %v692
    %v694 = vmul.f32 %v693, 2.0
    %v695 = vsub.f32 %v694, 1.0
    %v696 = vmul.f32 %v693, 0.0
    %698 = vrot.lane.b32.xlu0 %v695, 64
    %v699 = vpop.permute.xlu0 %698
    %v701 = vmul.f32 %v693, %v699
    %703 = vrot.lane.b32.xlu0 %v701, 32
    %v704 = vpop.permute.xlu0 %703
    %v706 = vadd.f32 %v696, %v704
    %v707 = vtanh.pop %v706
    %709 = vrot.lane.b32.xlu0 %v707, 64
    %v710 = vpop.permute.xlu0 %709
    %v712 = vmul.f32 %v693, %v710
    %714 = vrot.lane.b32.xlu0 %v712, 32
    %v715 = vpop.permute.xlu0 %714
    %v716 = vsel %vm613, %v715, 0
    %718 = vmatprep.subr.mxu0 0.0
    %719 = vmatpush1.msra.mxu0 %v52
    %720 = vmatprep.subr.mxu0 0.0
    %721 = vmatpush1.msra.mxu0 %v53
    %722 = vmatprep.subr.mxu0 0.0
    %723 = vmatpush1.msra.mxu0 %v54
    %724 = vmatprep.subr.mxu0 0.0
    %725 = vmatpush1.msra.mxu0 %v55
    %726 = vmatprep.subr.mxu0 0.0
    %727 = vmatpush1.msra.mxu0 0.0
    %728 = vmatprep.subr.mxu0 0.0
    %729 = vmatpush1.msra.mxu0 0.0
    %730 = vmatprep.subr.mxu0 0.0
    %731 = vmatpush1.msra.mxu0 0.0
    %732 = vmatprep.subr.mxu0 0.0
    %733 = vmatpush1.msra.mxu0 0.0
    %734 = vmatprep.subr.mxu0 0.0
    %735 = vmatpush1.msra.mxu0 0.0
    %736 = vmatprep.subr.mxu0 0.0
    %737 = vmatpush1.msra.mxu0 0.0
    %738 = vmatprep.subr.mxu0 0.0
    %739 = vmatpush1.msra.mxu0 0.0
    %740 = vmatprep.subr.mxu0 0.0
    %741 = vmatpush1.msra.mxu0 0.0
    %742 = vmatprep.subr.mxu0 0.0
    %743 = vmatpush1.msra.mxu0 0.0
    %744 = vmatprep.subr.mxu0 0.0
    %745 = vmatpush1.msra.mxu0 0.0
    %746 = vmatprep.subr.mxu0 0.0
    %747 = vmatpush1.msra.mxu0 0.0
    %748 = vmatprep.subr.mxu0 0.0
    %749 = vmatpush1.msra.mxu0 0.0
    %750 = vmatprep.subr.mxu0 0.0
    %751 = vmatpush1.msra.mxu0 0.0
    %752 = vmatprep.subr.mxu0 0.0
    %753 = vmatpush1.msra.mxu0 0.0
    %754 = vmatprep.subr.mxu0 0.0
    %755 = vmatpush1.msra.mxu0 0.0
    %756 = vmatprep.subr.mxu0 0.0
    %757 = vmatpush1.msra.mxu0 0.0
    %758 = vmatprep.subr.mxu0 0.0
    %759 = vmatpush1.msra.mxu0 0.0
    %760 = vmatprep.subr.mxu0 0.0
    %761 = vmatpush1.msra.mxu0 0.0
    %762 = vmatprep.subr.mxu0 0.0
    %763 = vmatpush1.msra.mxu0 0.0
    %764 = vmatprep.subr.mxu0 0.0
    %765 = vmatpush1.msra.mxu0 0.0
    %766 = vmatprep.subr.mxu0 0.0
    %767 = vmatpush1.msra.mxu0 0.0
    %768 = vmatprep.subr.mxu0 0.0
    %769 = vmatpush1.msra.mxu0 0.0
    %770 = vmatprep.subr.mxu0 0.0
    %771 = vmatpush1.msra.mxu0 0.0
    %772 = vmatprep.subr.mxu0 0.0
    %773 = vmatpush1.msra.mxu0 0.0
    %774 = vmatprep.subr.mxu0 0.0
    %775 = vmatpush1.msra.mxu0 0.0
    %776 = vmatprep.subr.mxu0 0.0
    %777 = vmatpush1.msra.mxu0 0.0
    %778 = vmatprep.subr.mxu0 0.0
    %779 = vmatpush1.msra.mxu0 0.0
    %780 = vmatprep.subr.mxu0 0.0
    %781 = vmatpush1.msra.mxu0 0.0
    %782 = vmatprep.mubr.f32.mxu0 0.0
    %783 = vmatmul.mubr.f32.gmra.mrb[0].mxu0 %v716
    %v784 = vpop.f32.mrb[0].mxu0
    %v785 = vadd.f32 0.0, %v784
    %v786 = vpop.f32.mrb[0].mxu0
    %787 = vdwg.mxu0
    %v788 = vadd.f32 %v179, %v785
    %v789 = vxor.u32 %v788, 2147483648
    %v790 = vmul.f32 %v789, 1.442695
    %v791 = vpow.pop %v790
    %v792 = vadd.f32 %v791, 1.0
    %v793 = vrcp.pop %v792
    %v794 = vmul.f32 1.0, %v793
    %v795 = vmul.f32 %v794, 2.0
    %v796 = vsub.f32 %v795, 1.0
    %v797 = vmul.f32 %v794, %v706
    %799 = vrot.lane.b32.xlu0 %v796, 64
    %v800 = vpop.permute.xlu0 %799
    %v802 = vmul.f32 %v794, %v800
    %804 = vrot.lane.b32.xlu0 %v802, 32
    %v805 = vpop.permute.xlu0 %804
    %v807 = vadd.f32 %v797, %v805
    %v808 = vtanh.pop %v807
    %810 = vrot.lane.b32.xlu0 %v808, 64
    %v811 = vpop.permute.xlu0 %810
    %v813 = vmul.f32 %v794, %v811
    %815 = vrot.lane.b32.xlu0 %v813, 32
    %v816 = vpop.permute.xlu0 %815
    %v817 = vsel %vm613, %v816, 0
    %819 = vmatprep.subr.mxu0 0.0
    %820 = vmatpush1.msra.mxu0 %v52
    %821 = vmatprep.subr.mxu0 0.0
    %822 = vmatpush1.msra.mxu0 %v53
    %823 = vmatprep.subr.mxu0 0.0
    %824 = vmatpush1.msra.mxu0 %v54
    %825 = vmatprep.subr.mxu0 0.0
    %826 = vmatpush1.msra.mxu0 %v55
    %827 = vmatprep.subr.mxu0 0.0
    %828 = vmatpush1.msra.mxu0 0.0
    %829 = vmatprep.subr.mxu0 0.0
    %830 = vmatpush1.msra.mxu0 0.0
    %831 = vmatprep.subr.mxu0 0.0
    %832 = vmatpush1.msra.mxu0 0.0
    %833 = vmatprep.subr.mxu0 0.0
    %834 = vmatpush1.msra.mxu0 0.0
    %835 = vmatprep.subr.mxu0 0.0
    %836 = vmatpush1.msra.mxu0 0.0
    %837 = vmatprep.subr.mxu0 0.0
    %838 = vmatpush1.msra.mxu0 0.0
    %839 = vmatprep.subr.mxu0 0.0
    %840 = vmatpush1.msra.mxu0 0.0
    %841 = vmatprep.subr.mxu0 0.0
    %842 = vmatpush1.msra.mxu0 0.0
    %843 = vmatprep.subr.mxu0 0.0
    %844 = vmatpush1.msra.mxu0 0.0
    %845 = vmatprep.subr.mxu0 0.0
    %846 = vmatpush1.msra.mxu0 0.0
    %847 = vmatprep.subr.mxu0 0.0
    %848 = vmatpush1.msra.mxu0 0.0
    %849 = vmatprep.subr.mxu0 0.0
    %850 = vmatpush1.msra.mxu0 0.0
    %851 = vmatprep.subr.mxu0 0.0
    %852 = vmatpush1.msra.mxu0 0.0
    %853 = vmatprep.subr.mxu0 0.0
    %854 = vmatpush1.msra.mxu0 0.0
    %855 = vmatprep.subr.mxu0 0.0
    %856 = vmatpush1.msra.mxu0 0.0
    %857 = vmatprep.subr.mxu0 0.0
    %858 = vmatpush1.msra.mxu0 0.0
    %859 = vmatprep.subr.mxu0 0.0
    %860 = vmatpush1.msra.mxu0 0.0
    %861 = vmatprep.subr.mxu0 0.0
    %862 = vmatpush1.msra.mxu0 0.0
    %863 = vmatprep.subr.mxu0 0.0
    %864 = vmatpush1.msra.mxu0 0.0
    %865 = vmatprep.subr.mxu0 0.0
    %866 = vmatpush1.msra.mxu0 0.0
    %867 = vmatprep.subr.mxu0 0.0
    %868 = vmatpush1.msra.mxu0 0.0
    %869 = vmatprep.subr.mxu0 0.0
    %870 = vmatpush1.msra.mxu0 0.0
    %871 = vmatprep.subr.mxu0 0.0
    %872 = vmatpush1.msra.mxu0 0.0
    %873 = vmatprep.subr.mxu0 0.0
    %874 = vmatpush1.msra.mxu0 0.0
    %875 = vmatprep.subr.mxu0 0.0
    %876 = vmatpush1.msra.mxu0 0.0
    %877 = vmatprep.subr.mxu0 0.0
    %878 = vmatpush1.msra.mxu0 0.0
    %879 = vmatprep.subr.mxu0 0.0
    %880 = vmatpush1.msra.mxu0 0.0
    %881 = vmatprep.subr.mxu0 0.0
    %882 = vmatpush1.msra.mxu0 0.0
    %883 = vmatprep.mubr.f32.mxu0 0.0
    %884 = vmatmul.mubr.f32.gmra.mrb[0].mxu0 %v817
    %v885 = vpop.f32.mrb[0].mxu0
    %v886 = vadd.f32 0.0, %v885
    %v887 = vpop.f32.mrb[0].mxu0
    %888 = vdwg.mxu0
    %v889 = vadd.f32 %v184, %v886
    %v890 = vxor.u32 %v889, 2147483648
    %v891 = vmul.f32 %v890, 1.442695
    %v892 = vpow.pop %v891
    %v893 = vadd.f32 %v892, 1.0
    %v894 = vrcp.pop %v893
    %v895 = vmul.f32 1.0, %v894
    %v896 = vmul.f32 %v895, 2.0
    %v897 = vsub.f32 %v896, 1.0
    %v898 = vmul.f32 %v895, %v807
    %900 = vrot.lane.b32.xlu0 %v897, 64
    %v901 = vpop.permute.xlu0 %900
    %v903 = vmul.f32 %v895, %v901
    %905 = vrot.lane.b32.xlu0 %v903, 32
    %v906 = vpop.permute.xlu0 %905
    %v908 = vadd.f32 %v898, %v906
    %v909 = vtanh.pop %v908
    %911 = vrot.lane.b32.xlu0 %v909, 64
    %v912 = vpop.permute.xlu0 %911
    %v914 = vmul.f32 %v895, %v912
    %916 = vrot.lane.b32.xlu0 %v914, 32
    %v917 = vpop.permute.xlu0 %916
    %v918 = vsel %vm613, %v917, 0
    %920 = vmatprep.subr.mxu0 0.0
    %921 = vmatpush1.msra.mxu0 %v52
    %922 = vmatprep.subr.mxu0 0.0
    %923 = vmatpush1.msra.mxu0 %v53
    %924 = vmatprep.subr.mxu0 0.0
    %925 = vmatpush1.msra.mxu0 %v54
    %926 = vmatprep.subr.mxu0 0.0
    %927 = vmatpush1.msra.mxu0 %v55
    %928 = vmatprep.subr.mxu0 0.0
    %929 = vmatpush1.msra.mxu0 0.0
    %930 = vmatprep.subr.mxu0 0.0
    %931 = vmatpush1.msra.mxu0 0.0
    %932 = vmatprep.subr.mxu0 0.0
    %933 = vmatpush1.msra.mxu0 0.0
    %934 = vmatprep.subr.mxu0 0.0
    %935 = vmatpush1.msra.mxu0 0.0
    %936 = vmatprep.subr.mxu0 0.0
    %937 = vmatpush1.msra.mxu0 0.0
    %938 = vmatprep.subr.mxu0 0.0
    %939 = vmatpush1.msra.mxu0 0.0
    %940 = vmatprep.subr.mxu0 0.0
    %941 = vmatpush1.msra.mxu0 0.0
    %942 = vmatprep.subr.mxu0 0.0
    %943 = vmatpush1.msra.mxu0 0.0
    %944 = vmatprep.subr.mxu0 0.0
    %945 = vmatpush1.msra.mxu0 0.0
    %946 = vmatprep.subr.mxu0 0.0
    %947 = vmatpush1.msra.mxu0 0.0
    %948 = vmatprep.subr.mxu0 0.0
    %949 = vmatpush1.msra.mxu0 0.0
    %950 = vmatprep.subr.mxu0 0.0
    %951 = vmatpush1.msra.mxu0 0.0
    %952 = vmatprep.subr.mxu0 0.0
    %953 = vmatpush1.msra.mxu0 0.0
    %954 = vmatprep.subr.mxu0 0.0
    %955 = vmatpush1.msra.mxu0 0.0
    %956 = vmatprep.subr.mxu0 0.0
    %957 = vmatpush1.msra.mxu0 0.0
    %958 = vmatprep.subr.mxu0 0.0
    %959 = vmatpush1.msra.mxu0 0.0
    %960 = vmatprep.subr.mxu0 0.0
    %961 = vmatpush1.msra.mxu0 0.0
    %962 = vmatprep.subr.mxu0 0.0
    %963 = vmatpush1.msra.mxu0 0.0
    %964 = vmatprep.subr.mxu0 0.0
    %965 = vmatpush1.msra.mxu0 0.0
    %966 = vmatprep.subr.mxu0 0.0
    %967 = vmatpush1.msra.mxu0 0.0
    %968 = vmatprep.subr.mxu0 0.0
    %969 = vmatpush1.msra.mxu0 0.0
    %970 = vmatprep.subr.mxu0 0.0
    %971 = vmatpush1.msra.mxu0 0.0
    %972 = vmatprep.subr.mxu0 0.0
    %973 = vmatpush1.msra.mxu0 0.0
    %974 = vmatprep.subr.mxu0 0.0
    %975 = vmatpush1.msra.mxu0 0.0
    %976 = vmatprep.subr.mxu0 0.0
    %977 = vmatpush1.msra.mxu0 0.0
    %978 = vmatprep.subr.mxu0 0.0
    %979 = vmatpush1.msra.mxu0 0.0
    %980 = vmatprep.subr.mxu0 0.0
    %981 = vmatpush1.msra.mxu0 0.0
    %982 = vmatprep.subr.mxu0 0.0
    %983 = vmatpush1.msra.mxu0 0.0
    %984 = vmatprep.mubr.f32.mxu0 0.0
    %985 = vmatmul.mubr.f32.gmra.mrb[0].mxu0 %v918
    %v986 = vpop.f32.mrb[0].mxu0
    %v987 = vadd.f32 0.0, %v986
    %v988 = vpop.f32.mrb[0].mxu0
    %989 = vdwg.mxu0
    %v990 = vadd.f32 %v189, %v987
    %v991 = vxor.u32 %v990, 2147483648
    %v992 = vmul.f32 %v991, 1.442695
    %v993 = vpow.pop %v992
    %v994 = vadd.f32 %v993, 1.0
    %v995 = vrcp.pop %v994
    %v996 = vmul.f32 1.0, %v995
    %v997 = vmul.f32 %v996, 2.0
    %v998 = vsub.f32 %v997, 1.0
    %v999 = vmul.f32 %v996, %v908
    %1001 = vrot.lane.b32.xlu0 %v998, 64
    %v1002 = vpop.permute.xlu0 %1001
    %v1004 = vmul.f32 %v996, %v1002
    %1006 = vrot.lane.b32.xlu0 %v1004, 32
    %v1007 = vpop.permute.xlu0 %1006
    %v1009 = vadd.f32 %v999, %v1007
    %v1010 = vtanh.pop %v1009
    %1012 = vrot.lane.b32.xlu0 %v1010, 64
    %v1013 = vpop.permute.xlu0 %1012
    %v1015 = vmul.f32 %v996, %v1013
    %1017 = vrot.lane.b32.xlu0 %v1015, 32
    %v1018 = vpop.permute.xlu0 %1017
    %v1019 = vsel %vm613, %v1018, 0
    %1021 = vmatprep.subr.mxu0 0.0
    %1022 = vmatpush1.msra.mxu0 %v52
    %1023 = vmatprep.subr.mxu0 0.0
    %1024 = vmatpush1.msra.mxu0 %v53
    %1025 = vmatprep.subr.mxu0 0.0
    %1026 = vmatpush1.msra.mxu0 %v54
    %1027 = vmatprep.subr.mxu0 0.0
    %1028 = vmatpush1.msra.mxu0 %v55
    %1029 = vmatprep.subr.mxu0 0.0
    %1030 = vmatpush1.msra.mxu0 0.0
    %1031 = vmatprep.subr.mxu0 0.0
    %1032 = vmatpush1.msra.mxu0 0.0
    %1033 = vmatprep.subr.mxu0 0.0
    %1034 = vmatpush1.msra.mxu0 0.0
    %1035 = vmatprep.subr.mxu0 0.0
    %1036 = vmatpush1.msra.mxu0 0.0
    %1037 = vmatprep.subr.mxu0 0.0
    %1038 = vmatpush1.msra.mxu0 0.0
    %1039 = vmatprep.subr.mxu0 0.0
    %1040 = vmatpush1.msra.mxu0 0.0
    %1041 = vmatprep.subr.mxu0 0.0
    %1042 = vmatpush1.msra.mxu0 0.0
    %1043 = vmatprep.subr.mxu0 0.0
    %1044 = vmatpush1.msra.mxu0 0.0
    %1045 = vmatprep.subr.mxu0 0.0
    %1046 = vmatpush1.msra.mxu0 0.0
    %1047 = vmatprep.subr.mxu0 0.0
    %1048 = vmatpush1.msra.mxu0 0.0
    %1049 = vmatprep.subr.mxu0 0.0
    %1050 = vmatpush1.msra.mxu0 0.0
    %1051 = vmatprep.subr.mxu0 0.0
    %1052 = vmatpush1.msra.mxu0 0.0
    %1053 = vmatprep.subr.mxu0 0.0
    %1054 = vmatpush1.msra.mxu0 0.0
    %1055 = vmatprep.subr.mxu0 0.0
    %1056 = vmatpush1.msra.mxu0 0.0
    %1057 = vmatprep.subr.mxu0 0.0
    %1058 = vmatpush1.msra.mxu0 0.0
    %1059 = vmatprep.subr.mxu0 0.0
    %1060 = vmatpush1.msra.mxu0 0.0
    %1061 = vmatprep.subr.mxu0 0.0
    %1062 = vmatpush1.msra.mxu0 0.0
    %1063 = vmatprep.subr.mxu0 0.0
    %1064 = vmatpush1.msra.mxu0 0.0
    %1065 = vmatprep.subr.mxu0 0.0
    %1066 = vmatpush1.msra.mxu0 0.0
    %1067 = vmatprep.subr.mxu0 0.0
    %1068 = vmatpush1.msra.mxu0 0.0
    %1069 = vmatprep.subr.mxu0 0.0
    %1070 = vmatpush1.msra.mxu0 0.0
    %1071 = vmatprep.subr.mxu0 0.0
    %1072 = vmatpush1.msra.mxu0 0.0
    %1073 = vmatprep.subr.mxu0 0.0
    %1074 = vmatpush1.msra.mxu0 0.0
    %1075 = vmatprep.subr.mxu0 0.0
    %1076 = vmatpush1.msra.mxu0 0.0
    %1077 = vmatprep.subr.mxu0 0.0
    %1078 = vmatpush1.msra.mxu0 0.0
    %1079 = vmatprep.subr.mxu0 0.0
    %1080 = vmatpush1.msra.mxu0 0.0
    %1081 = vmatprep.subr.mxu0 0.0
    %1082 = vmatpush1.msra.mxu0 0.0
    %1083 = vmatprep.subr.mxu0 0.0
    %1084 = vmatpush1.msra.mxu0 0.0
    %1085 = vmatprep.mubr.f32.mxu0 0.0
    %1086 = vmatmul.mubr.f32.gmra.mrb[0].mxu0 %v1019
    %v1087 = vpop.f32.mrb[0].mxu0
    %v1088 = vadd.f32 0.0, %v1087
    %v1089 = vpop.f32.mrb[0].mxu0
    %1090 = vdwg.mxu0
    %v1091 = vadd.f32 %v194, %v1088
    %v1092 = vxor.u32 %v1091, 2147483648
    %v1093 = vmul.f32 %v1092, 1.442695
    %v1094 = vpow.pop %v1093
    %v1095 = vadd.f32 %v1094, 1.0
    %v1096 = vrcp.pop %v1095
    %v1097 = vmul.f32 1.0, %v1096
    %v1098 = vmul.f32 %v1097, 2.0
    %v1099 = vsub.f32 %v1098, 1.0
    %v1100 = vmul.f32 %v1097, %v1009
    %1102 = vrot.lane.b32.xlu0 %v1099, 64
    %v1103 = vpop.permute.xlu0 %1102
    %v1105 = vmul.f32 %v1097, %v1103
    %1107 = vrot.lane.b32.xlu0 %v1105, 32
    %v1108 = vpop.permute.xlu0 %1107
    %v1110 = vadd.f32 %v1100, %v1108
    %v1111 = vtanh.pop %v1110
    %1113 = vrot.lane.b32.xlu0 %v1111, 64
    %v1114 = vpop.permute.xlu0 %1113
    %v1116 = vmul.f32 %v1097, %v1114
    %1118 = vrot.lane.b32.xlu0 %v1116, 32
    %v1119 = vpop.permute.xlu0 %1118
    %v1120 = vsel %vm613, %v1119, 0
    %1122 = vmatprep.subr.mxu0 0.0
    %1123 = vmatpush1.msra.mxu0 %v52
    %1124 = vmatprep.subr.mxu0 0.0
    %1125 = vmatpush1.msra.mxu0 %v53
    %1126 = vmatprep.subr.mxu0 0.0
    %1127 = vmatpush1.msra.mxu0 %v54
    %1128 = vmatprep.subr.mxu0 0.0
    %1129 = vmatpush1.msra.mxu0 %v55
    %1130 = vmatprep.subr.mxu0 0.0
    %1131 = vmatpush1.msra.mxu0 0.0
    %1132 = vmatprep.subr.mxu0 0.0
    %1133 = vmatpush1.msra.mxu0 0.0
    %1134 = vmatprep.subr.mxu0 0.0
    %1135 = vmatpush1.msra.mxu0 0.0
    %1136 = vmatprep.subr.mxu0 0.0
    %1137 = vmatpush1.msra.mxu0 0.0
    %1138 = vmatprep.subr.mxu0 0.0
    %1139 = vmatpush1.msra.mxu0 0.0
    %1140 = vmatprep.subr.mxu0 0.0
    %1141 = vmatpush1.msra.mxu0 0.0
    %1142 = vmatprep.subr.mxu0 0.0
    %1143 = vmatpush1.msra.mxu0 0.0
    %1144 = vmatprep.subr.mxu0 0.0
    %1145 = vmatpush1.msra.mxu0 0.0
    %1146 = vmatprep.subr.mxu0 0.0
    %1147 = vmatpush1.msra.mxu0 0.0
    %1148 = vmatprep.subr.mxu0 0.0
    %1149 = vmatpush1.msra.mxu0 0.0
    %1150 = vmatprep.subr.mxu0 0.0
    %1151 = vmatpush1.msra.mxu0 0.0
    %1152 = vmatprep.subr.mxu0 0.0
    %1153 = vmatpush1.msra.mxu0 0.0
    %1154 = vmatprep.subr.mxu0 0.0
    %1155 = vmatpush1.msra.mxu0 0.0
    %1156 = vmatprep.subr.mxu0 0.0
    %1157 = vmatpush1.msra.mxu0 0.0
    %1158 = vmatprep.subr.mxu0 0.0
    %1159 = vmatpush1.msra.mxu0 0.0
    %1160 = vmatprep.subr.mxu0 0.0
    %1161 = vmatpush1.msra.mxu0 0.0
    %1162 = vmatprep.subr.mxu0 0.0
    %1163 = vmatpush1.msra.mxu0 0.0
    %1164 = vmatprep.subr.mxu0 0.0
    %1165 = vmatpush1.msra.mxu0 0.0
    %1166 = vmatprep.subr.mxu0 0.0
    %1167 = vmatpush1.msra.mxu0 0.0
    %1168 = vmatprep.subr.mxu0 0.0
    %1169 = vmatpush1.msra.mxu0 0.0
    %1170 = vmatprep.subr.mxu0 0.0
    %1171 = vmatpush1.msra.mxu0 0.0
    %1172 = vmatprep.subr.mxu0 0.0
    %1173 = vmatpush1.msra.mxu0 0.0
    %1174 = vmatprep.subr.mxu0 0.0
    %1175 = vmatpush1.msra.mxu0 0.0
    %1176 = vmatprep.subr.mxu0 0.0
    %1177 = vmatpush1.msra.mxu0 0.0
    %1178 = vmatprep.subr.mxu0 0.0
    %1179 = vmatpush1.msra.mxu0 0.0
    %1180 = vmatprep.subr.mxu0 0.0
    %1181 = vmatpush1.msra.mxu0 0.0
    %1182 = vmatprep.subr.mxu0 0.0
    %1183 = vmatpush1.msra.mxu0 0.0
    %1184 = vmatprep.subr.mxu0 0.0
    %1185 = vmatpush1.msra.mxu0 0.0
    %1186 = vmatprep.mubr.f32.mxu0 0.0
    %1187 = vmatmul.mubr.f32.gmra.mrb[0].mxu0 %v1120
    %v1188 = vpop.f32.mrb[0].mxu0
    %v1189 = vadd.f32 0.0, %v1188
    %v1190 = vpop.f32.mrb[0].mxu0
    %1191 = vdwg.mxu0
    %v1192 = vadd.f32 %v199, %v1189
    %v1193 = vxor.u32 %v1192, 2147483648
    %v1194 = vmul.f32 %v1193, 1.442695
    %v1195 = vpow.pop %v1194
    %v1196 = vadd.f32 %v1195, 1.0
    %v1197 = vrcp.pop %v1196
    %v1198 = vmul.f32 1.0, %v1197
    %v1199 = vmul.f32 %v1198, 2.0
    %v1200 = vsub.f32 %v1199, 1.0
    %v1201 = vmul.f32 %v1198, %v1110
    %1203 = vrot.lane.b32.xlu0 %v1200, 64
    %v1204 = vpop.permute.xlu0 %1203
    %v1206 = vmul.f32 %v1198, %v1204
    %1208 = vrot.lane.b32.xlu0 %v1206, 32
    %v1209 = vpop.permute.xlu0 %1208
    %v1211 = vadd.f32 %v1201, %v1209
    %v1212 = vtanh.pop %v1211
    %1214 = vrot.lane.b32.xlu0 %v1212, 64
    %v1215 = vpop.permute.xlu0 %1214
    %v1217 = vmul.f32 %v1198, %v1215
    %1219 = vrot.lane.b32.xlu0 %v1217, 32
    %v1220 = vpop.permute.xlu0 %1219
    %v1221 = vsel %vm613, %v1220, 0
    %1223 = vmatprep.subr.mxu0 0.0
    %1224 = vmatpush1.msra.mxu0 %v52
    %1225 = vmatprep.subr.mxu0 0.0
    %1226 = vmatpush1.msra.mxu0 %v53
    %1227 = vmatprep.subr.mxu0 0.0
    %1228 = vmatpush1.msra.mxu0 %v54
    %1229 = vmatprep.subr.mxu0 0.0
    %1230 = vmatpush1.msra.mxu0 %v55
    %1231 = vmatprep.subr.mxu0 0.0
    %1232 = vmatpush1.msra.mxu0 0.0
    %1233 = vmatprep.subr.mxu0 0.0
    %1234 = vmatpush1.msra.mxu0 0.0
    %1235 = vmatprep.subr.mxu0 0.0
    %1236 = vmatpush1.msra.mxu0 0.0
    %1237 = vmatprep.subr.mxu0 0.0
    %1238 = vmatpush1.msra.mxu0 0.0
    %1239 = vmatprep.subr.mxu0 0.0
    %1240 = vmatpush1.msra.mxu0 0.0
    %1241 = vmatprep.subr.mxu0 0.0
    %1242 = vmatpush1.msra.mxu0 0.0
    %1243 = vmatprep.subr.mxu0 0.0
    %1244 = vmatpush1.msra.mxu0 0.0
    %1245 = vmatprep.subr.mxu0 0.0
    %1246 = vmatpush1.msra.mxu0 0.0
    %1247 = vmatprep.subr.mxu0 0.0
    %1248 = vmatpush1.msra.mxu0 0.0
    %1249 = vmatprep.subr.mxu0 0.0
    %1250 = vmatpush1.msra.mxu0 0.0
    %1251 = vmatprep.subr.mxu0 0.0
    %1252 = vmatpush1.msra.mxu0 0.0
    %1253 = vmatprep.subr.mxu0 0.0
    %1254 = vmatpush1.msra.mxu0 0.0
    %1255 = vmatprep.subr.mxu0 0.0
    %1256 = vmatpush1.msra.mxu0 0.0
    %1257 = vmatprep.subr.mxu0 0.0
    %1258 = vmatpush1.msra.mxu0 0.0
    %1259 = vmatprep.subr.mxu0 0.0
    %1260 = vmatpush1.msra.mxu0 0.0
    %1261 = vmatprep.subr.mxu0 0.0
    %1262 = vmatpush1.msra.mxu0 0.0
    %1263 = vmatprep.subr.mxu0 0.0
    %1264 = vmatpush1.msra.mxu0 0.0
    %1265 = vmatprep.subr.mxu0 0.0
    %1266 = vmatpush1.msra.mxu0 0.0
    %1267 = vmatprep.subr.mxu0 0.0
    %1268 = vmatpush1.msra.mxu0 0.0
    %1269 = vmatprep.subr.mxu0 0.0
    %1270 = vmatpush1.msra.mxu0 0.0
    %1271 = vmatprep.subr.mxu0 0.0
    %1272 = vmatpush1.msra.mxu0 0.0
    %1273 = vmatprep.subr.mxu0 0.0
    %1274 = vmatpush1.msra.mxu0 0.0
    %1275 = vmatprep.subr.mxu0 0.0
    %1276 = vmatpush1.msra.mxu0 0.0
    %1277 = vmatprep.subr.mxu0 0.0
    %1278 = vmatpush1.msra.mxu0 0.0
    %1279 = vmatprep.subr.mxu0 0.0
    %1280 = vmatpush1.msra.mxu0 0.0
    %1281 = vmatprep.subr.mxu0 0.0
    %1282 = vmatpush1.msra.mxu0 0.0
    %1283 = vmatprep.subr.mxu0 0.0
    %1284 = vmatpush1.msra.mxu0 0.0
    %1285 = vmatprep.subr.mxu0 0.0
    %1286 = vmatpush1.msra.mxu0 0.0
    %1287 = vmatprep.mubr.f32.mxu0 0.0
    %1288 = vmatmul.mubr.f32.gmra.mrb[0].mxu0 %v1221
    %v1289 = vpop.f32.mrb[0].mxu0
    %v1290 = vadd.f32 0.0, %v1289
    %v1291 = vpop.f32.mrb[0].mxu0
    %1292 = vdwg.mxu0
    %v1293 = vadd.f32 %v204, %v1290
    %v1294 = vxor.u32 %v1293, 2147483648
    %v1295 = vmul.f32 %v1294, 1.442695
    %v1296 = vpow.pop %v1295
    %v1297 = vadd.f32 %v1296, 1.0
    %v1298 = vrcp.pop %v1297
    %v1299 = vmul.f32 1.0, %v1298
    %v1300 = vmul.f32 %v1299, 2.0
    %v1301 = vsub.f32 %v1300, 1.0
    %v1302 = vmul.f32 %v1299, %v1211
    %1304 = vrot.lane.b32.xlu0 %v1301, 64
    %v1305 = vpop.permute.xlu0 %1304
    %v1307 = vmul.f32 %v1299, %v1305
    %1309 = vrot.lane.b32.xlu0 %v1307, 32
    %v1310 = vpop.permute.xlu0 %1309
    %v1312 = vadd.f32 %v1302, %v1310
    %v1313 = vtanh.pop %v1312
    %1315 = vrot.lane.b32.xlu0 %v1313, 64
    %v1316 = vpop.permute.xlu0 %1315
    %v1318 = vmul.f32 %v1299, %v1316
    %1320 = vrot.lane.b32.xlu0 %v1318, 32
    %v1321 = vpop.permute.xlu0 %1320
    %v1322 = vsel %vm613, %v1321, 0
    %1324 = vmatprep.subr.mxu0 0.0
    %1325 = vmatpush1.msra.mxu0 %v52
    %1326 = vmatprep.subr.mxu0 0.0
    %1327 = vmatpush1.msra.mxu0 %v53
    %1328 = vmatprep.subr.mxu0 0.0
    %1329 = vmatpush1.msra.mxu0 %v54
    %1330 = vmatprep.subr.mxu0 0.0
    %1331 = vmatpush1.msra.mxu0 %v55
    %1332 = vmatprep.subr.mxu0 0.0
    %1333 = vmatpush1.msra.mxu0 0.0
    %1334 = vmatprep.subr.mxu0 0.0
    %1335 = vmatpush1.msra.mxu0 0.0
    %1336 = vmatprep.subr.mxu0 0.0
    %1337 = vmatpush1.msra.mxu0 0.0
    %1338 = vmatprep.subr.mxu0 0.0
    %1339 = vmatpush1.msra.mxu0 0.0
    %1340 = vmatprep.subr.mxu0 0.0
    %1341 = vmatpush1.msra.mxu0 0.0
    %1342 = vmatprep.subr.mxu0 0.0
    %1343 = vmatpush1.msra.mxu0 0.0
    %1344 = vmatprep.subr.mxu0 0.0
    %1345 = vmatpush1.msra.mxu0 0.0
    %1346 = vmatprep.subr.mxu0 0.0
    %1347 = vmatpush1.msra.mxu0 0.0
    %1348 = vmatprep.subr.mxu0 0.0
    %1349 = vmatpush1.msra.mxu0 0.0
    %1350 = vmatprep.subr.mxu0 0.0
    %1351 = vmatpush1.msra.mxu0 0.0
    %1352 = vmatprep.subr.mxu0 0.0
    %1353 = vmatpush1.msra.mxu0 0.0
    %1354 = vmatprep.subr.mxu0 0.0
    %1355 = vmatpush1.msra.mxu0 0.0
    %1356 = vmatprep.subr.mxu0 0.0
    %1357 = vmatpush1.msra.mxu0 0.0
    %1358 = vmatprep.subr.mxu0 0.0
    %1359 = vmatpush1.msra.mxu0 0.0
    %1360 = vmatprep.subr.mxu0 0.0
    %1361 = vmatpush1.msra.mxu0 0.0
    %1362 = vmatprep.subr.mxu0 0.0
    %1363 = vmatpush1.msra.mxu0 0.0
    %1364 = vmatprep.subr.mxu0 0.0
    %1365 = vmatpush1.msra.mxu0 0.0
    %1366 = vmatprep.subr.mxu0 0.0
    %1367 = vmatpush1.msra.mxu0 0.0
    %1368 = vmatprep.subr.mxu0 0.0
    %1369 = vmatpush1.msra.mxu0 0.0
    %1370 = vmatprep.subr.mxu0 0.0
    %1371 = vmatpush1.msra.mxu0 0.0
    %1372 = vmatprep.subr.mxu0 0.0
    %1373 = vmatpush1.msra.mxu0 0.0
    %1374 = vmatprep.subr.mxu0 0.0
    %1375 = vmatpush1.msra.mxu0 0.0
    %1376 = vmatprep.subr.mxu0 0.0
    %1377 = vmatpush1.msra.mxu0 0.0
    %1378 = vmatprep.subr.mxu0 0.0
    %1379 = vmatpush1.msra.mxu0 0.0
    %1380 = vmatprep.subr.mxu0 0.0
    %1381 = vmatpush1.msra.mxu0 0.0
    %1382 = vmatprep.subr.mxu0 0.0
    %1383 = vmatpush1.msra.mxu0 0.0
    %1384 = vmatprep.subr.mxu0 0.0
    %1385 = vmatpush1.msra.mxu0 0.0
    %1386 = vmatprep.subr.mxu0 0.0
    %1387 = vmatpush1.msra.mxu0 0.0
    %1388 = vmatprep.mubr.f32.mxu0 0.0
    %1389 = vmatmul.mubr.f32.gmra.mrb[0].mxu0 %v1322
    %v1390 = vpop.f32.mrb[0].mxu0
    %v1391 = vadd.f32 0.0, %v1390
    %v1392 = vpop.f32.mrb[0].mxu0
    %1393 = vdwg.mxu0
    %v1394 = vadd.f32 %v209, %v1391
    %v1395 = vxor.u32 %v1394, 2147483648
    %v1396 = vmul.f32 %v1395, 1.442695
    %v1397 = vpow.pop %v1396
    %v1398 = vadd.f32 %v1397, 1.0
    %v1399 = vrcp.pop %v1398
    %v1400 = vmul.f32 1.0, %v1399
    %v1401 = vmul.f32 %v1400, 2.0
    %v1402 = vsub.f32 %v1401, 1.0
    %v1403 = vmul.f32 %v1400, %v1312
    %1405 = vrot.lane.b32.xlu0 %v1402, 64
    %v1406 = vpop.permute.xlu0 %1405
    %v1408 = vmul.f32 %v1400, %v1406
    %1410 = vrot.lane.b32.xlu0 %v1408, 32
    %v1411 = vpop.permute.xlu0 %1410
    %v1413 = vadd.f32 %v1403, %v1411
    %v1414 = vtanh.pop %v1413
    %1416 = vrot.lane.b32.xlu0 %v1414, 64
    %v1417 = vpop.permute.xlu0 %1416
    %v1419 = vmul.f32 %v1400, %v1417
    %1421 = vrot.lane.b32.xlu0 %v1419, 32
    %v1422 = vpop.permute.xlu0 %1421
    %v1423 = vsel %vm613, %v1422, 0
    %1425 = vmatprep.subr.mxu0 0.0
    %1426 = vmatpush1.msra.mxu0 %v58
    %1427 = vmatprep.subr.mxu0 0.0
    %1428 = vmatpush1.msra.mxu0 %v59
    %1429 = vmatprep.subr.mxu0 0.0
    %1430 = vmatpush1.msra.mxu0 %v60
    %1431 = vmatprep.subr.mxu0 0.0
    %1432 = vmatpush1.msra.mxu0 %v61
    %1433 = vmatprep.subr.mxu0 0.0
    %1434 = vmatpush1.msra.mxu0 0.0
    %1435 = vmatprep.subr.mxu0 0.0
    %1436 = vmatpush1.msra.mxu0 0.0
    %1437 = vmatprep.subr.mxu0 0.0
    %1438 = vmatpush1.msra.mxu0 0.0
    %1439 = vmatprep.subr.mxu0 0.0
    %1440 = vmatpush1.msra.mxu0 0.0
    %1441 = vmatprep.subr.mxu0 0.0
    %1442 = vmatpush1.msra.mxu0 0.0
    %1443 = vmatprep.subr.mxu0 0.0
    %1444 = vmatpush1.msra.mxu0 0.0
    %1445 = vmatprep.subr.mxu0 0.0
    %1446 = vmatpush1.msra.mxu0 0.0
    %1447 = vmatprep.subr.mxu0 0.0
    %1448 = vmatpush1.msra.mxu0 0.0
    %1449 = vmatprep.subr.mxu0 0.0
    %1450 = vmatpush1.msra.mxu0 0.0
    %1451 = vmatprep.subr.mxu0 0.0
    %1452 = vmatpush1.msra.mxu0 0.0
    %1453 = vmatprep.subr.mxu0 0.0
    %1454 = vmatpush1.msra.mxu0 0.0
    %1455 = vmatprep.subr.mxu0 0.0
    %1456 = vmatpush1.msra.mxu0 0.0
    %1457 = vmatprep.subr.mxu0 0.0
    %1458 = vmatpush1.msra.mxu0 0.0
    %1459 = vmatprep.subr.mxu0 0.0
    %1460 = vmatpush1.msra.mxu0 0.0
    %1461 = vmatprep.subr.mxu0 0.0
    %1462 = vmatpush1.msra.mxu0 0.0
    %1463 = vmatprep.subr.mxu0 0.0
    %1464 = vmatpush1.msra.mxu0 0.0
    %1465 = vmatprep.subr.mxu0 0.0
    %1466 = vmatpush1.msra.mxu0 0.0
    %1467 = vmatprep.subr.mxu0 0.0
    %1468 = vmatpush1.msra.mxu0 0.0
    %1469 = vmatprep.subr.mxu0 0.0
    %1470 = vmatpush1.msra.mxu0 0.0
    %1471 = vmatprep.subr.mxu0 0.0
    %1472 = vmatpush1.msra.mxu0 0.0
    %1473 = vmatprep.subr.mxu0 0.0
    %1474 = vmatpush1.msra.mxu0 0.0
    %1475 = vmatprep.subr.mxu0 0.0
    %1476 = vmatpush1.msra.mxu0 0.0
    %1477 = vmatprep.subr.mxu0 0.0
    %1478 = vmatpush1.msra.mxu0 0.0
    %1479 = vmatprep.subr.mxu0 0.0
    %1480 = vmatpush1.msra.mxu0 0.0
    %1481 = vmatprep.subr.mxu0 0.0
    %1482 = vmatpush1.msra.mxu0 0.0
    %1483 = vmatprep.subr.mxu0 0.0
    %1484 = vmatpush1.msra.mxu0 0.0
    %1485 = vmatprep.subr.mxu0 0.0
    %1486 = vmatpush1.msra.mxu0 0.0
    %1487 = vmatprep.subr.mxu0 0.0
    %1488 = vmatpush1.msra.mxu0 0.0
    %1489 = vmatprep.mubr.f32.mxu0 0.0
    %1490 = vmatmul.mubr.f32.gmra.mrb[0].mxu0 %v1423
    %v1491 = vpop.f32.mrb[0].mxu0
    %v1492 = vadd.f32 0.0, %v1491
    %v1493 = vpop.f32.mrb[0].mxu0
    %1494 = vdwg.mxu0
    %v1495 = vadd.f32 %v559, %v1492
    %v1496 = vxor.u32 %v1495, 2147483648
    %v1497 = vmul.f32 %v1496, 1.442695
    %v1498 = vpow.pop %v1497
    %v1499 = vadd.f32 %v1498, 1.0
    %v1500 = vrcp.pop %v1499
    %v1501 = vmul.f32 1.0, %v1500
    %v1502 = vmul.f32 %v1501, 2.0
    %v1503 = vsub.f32 %v1502, 1.0
    %v1504 = vmul.f32 %v1501, %v1413
    %1506 = vrot.lane.b32.xlu0 %v1503, 64
    %v1507 = vpop.permute.xlu0 %1506
    %v1509 = vmul.f32 %v1501, %v1507
    %1511 = vrot.lane.b32.xlu0 %v1509, 32
    %v1512 = vpop.permute.xlu0 %1511
    %v1514 = vadd.f32 %v1504, %v1512
    %v1515 = vtanh.pop %v1514
    %1517 = vrot.lane.b32.xlu0 %v1515, 64
    %v1518 = vpop.permute.xlu0 %1517
    %v1520 = vmul.f32 %v1501, %v1518
    %1522 = vrot.lane.b32.xlu0 %v1520, 32
    %v1523 = vpop.permute.xlu0 %1522
    %1525 = vst.msk [vmem:[#allocation2] sm:$0xff] %vm613, %v1523
    %v1526 = vsel %vm613, %v1523, 0
    %1528 = vmatprep.subr.mxu0 0.0
    %1529 = vmatpush1.msra.mxu0 %v570
    %1530 = vmatprep.subr.mxu0 0.0
    %1531 = vmatpush1.msra.mxu0 %v571
    %1532 = vmatprep.subr.mxu0 0.0
    %1533 = vmatpush1.msra.mxu0 %v572
    %1534 = vmatprep.subr.mxu0 0.0
    %1535 = vmatpush1.msra.mxu0 %v573
    %1536 = vmatprep.subr.mxu0 0.0
    %1537 = vmatpush1.msra.mxu0 0.0
    %1538 = vmatprep.subr.mxu0 0.0
    %1539 = vmatpush1.msra.mxu0 0.0
    %1540 = vmatprep.subr.mxu0 0.0
    %1541 = vmatpush1.msra.mxu0 0.0
    %1542 = vmatprep.subr.mxu0 0.0
    %1543 = vmatpush1.msra.mxu0 0.0
    %1544 = vmatprep.subr.mxu0 0.0
    %1545 = vmatpush1.msra.mxu0 0.0
    %1546 = vmatprep.subr.mxu0 0.0
    %1547 = vmatpush1.msra.mxu0 0.0
    %1548 = vmatprep.subr.mxu0 0.0
    %1549 = vmatpush1.msra.mxu0 0.0
    %1550 = vmatprep.subr.mxu0 0.0
    %1551 = vmatpush1.msra.mxu0 0.0
    %1552 = vmatprep.subr.mxu0 0.0
    %1553 = vmatpush1.msra.mxu0 0.0
    %1554 = vmatprep.subr.mxu0 0.0
    %1555 = vmatpush1.msra.mxu0 0.0
    %1556 = vmatprep.subr.mxu0 0.0
    %1557 = vmatpush1.msra.mxu0 0.0
    %1558 = vmatprep.subr.mxu0 0.0
    %1559 = vmatpush1.msra.mxu0 0.0
    %1560 = vmatprep.subr.mxu0 0.0
    %1561 = vmatpush1.msra.mxu0 0.0
    %1562 = vmatprep.subr.mxu0 0.0
    %1563 = vmatpush1.msra.mxu0 0.0
    %1564 = vmatprep.subr.mxu0 0.0
    %1565 = vmatpush1.msra.mxu0 0.0
    %1566 = vmatprep.subr.mxu0 0.0
    %1567 = vmatpush1.msra.mxu0 0.0
    %1568 = vmatprep.subr.mxu0 0.0
    %1569 = vmatpush1.msra.mxu0 0.0
    %1570 = vmatprep.subr.mxu0 0.0
    %1571 = vmatpush1.msra.mxu0 0.0
    %1572 = vmatprep.subr.mxu0 0.0
    %1573 = vmatpush1.msra.mxu0 0.0
    %1574 = vmatprep.subr.mxu0 0.0
    %1575 = vmatpush1.msra.mxu0 0.0
    %1576 = vmatprep.subr.mxu0 0.0
    %1577 = vmatpush1.msra.mxu0 0.0
    %1578 = vmatprep.subr.mxu0 0.0
    %1579 = vmatpush1.msra.mxu0 0.0
    %1580 = vmatprep.subr.mxu0 0.0
    %1581 = vmatpush1.msra.mxu0 0.0
    %1582 = vmatprep.subr.mxu0 0.0
    %1583 = vmatpush1.msra.mxu0 0.0
    %1584 = vmatprep.subr.mxu0 0.0
    %1585 = vmatpush1.msra.mxu0 0.0
    %1586 = vmatprep.subr.mxu0 0.0
    %1587 = vmatpush1.msra.mxu0 0.0
    %1588 = vmatprep.subr.mxu0 0.0
    %1589 = vmatpush1.msra.mxu0 0.0
    %1590 = vmatprep.subr.mxu0 0.0
    %1591 = vmatpush1.msra.mxu0 0.0
    %1592 = vmatprep.mubr.f32.mxu0 0.0
    %1593 = vmatmul.mubr.f32.gmra.mrb[0].mxu0 %v1526
    %v1594 = vpop.f32.mrb[0].mxu0
    %v1595 = vadd.f32 %v578, %v1594
    %v1596 = vpop.f32.mrb[0].mxu0
    %1597 = vdwg.mxu0
    %v1598 = vxor.u32 %v1595, 2147483648
    %v1599 = vmul.f32 %v1598, 1.442695
    %v1600 = vpow.pop %v1599
    %v1601 = vadd.f32 %v1600, 1.0
    %v1602 = vrcp.pop %v1601
    %v1603 = vmul.f32 1.0, %v1602
    %v1604 = vmul.f32 %v1603, 2.0
    %v1605 = vsub.f32 %v1604, 1.0
    %v1606 = vmul.f32 %v1603, %v1514
    %1608 = vrot.lane.b32.xlu0 %v1605, 64
    %v1609 = vpop.permute.xlu0 %1608
    %v1611 = vmul.f32 %v1603, %v1609
    %1613 = vrot.lane.b32.xlu0 %v1611, 32
    %v1614 = vpop.permute.xlu0 %1613
    %v1616 = vadd.f32 %v1606, %v1614
    %v1617 = vtanh.pop %v1616
    %1619 = vrot.lane.b32.xlu0 %v1617, 64
    %v1620 = vpop.permute.xlu0 %1619
    %v1622 = vmul.f32 %v1603, %v1620
    %1624 = vrot.lane.b32.xlu0 %v1622, 32
    %v1625 = vpop.permute.xlu0 %1624
    %1627 = vst.msk [vmem:[#allocation2 + $0x8] sm:$0xff] %vm613, %v1625
    %v1628 = vsel %vm613, %v1625, 0
    %1630 = vmatprep.subr.mxu0 0.0
    %1631 = vmatpush1.msra.mxu0 %v587
    %1632 = vmatprep.subr.mxu0 0.0
    %1633 = vmatpush1.msra.mxu0 %v588
    %1634 = vmatprep.subr.mxu0 0.0
    %1635 = vmatpush1.msra.mxu0 %v589
    %1636 = vmatprep.subr.mxu0 0.0
    %1637 = vmatpush1.msra.mxu0 %v590
    %1638 = vmatprep.subr.mxu0 0.0
    %1639 = vmatpush1.msra.mxu0 0.0
    %1640 = vmatprep.subr.mxu0 0.0
    %1641 = vmatpush1.msra.mxu0 0.0
    %1642 = vmatprep.subr.mxu0 0.0
    %1643 = vmatpush1.msra.mxu0 0.0
    %1644 = vmatprep.subr.mxu0 0.0
    %1645 = vmatpush1.msra.mxu0 0.0
    %1646 = vmatprep.subr.mxu0 0.0
    %1647 = vmatpush1.msra.mxu0 0.0
    %1648 = vmatprep.subr.mxu0 0.0
    %1649 = vmatpush1.msra.mxu0 0.0
    %1650 = vmatprep.subr.mxu0 0.0
    %1651 = vmatpush1.msra.mxu0 0.0
    %1652 = vmatprep.subr.mxu0 0.0
    %1653 = vmatpush1.msra.mxu0 0.0
    %1654 = vmatprep.subr.mxu0 0.0
    %1655 = vmatpush1.msra.mxu0 0.0
    %1656 = vmatprep.subr.mxu0 0.0
    %1657 = vmatpush1.msra.mxu0 0.0
    %1658 = vmatprep.subr.mxu0 0.0
    %1659 = vmatpush1.msra.mxu0 0.0
    %1660 = vmatprep.subr.mxu0 0.0
    %1661 = vmatpush1.msra.mxu0 0.0
    %1662 = vmatprep.subr.mxu0 0.0
    %1663 = vmatpush1.msra.mxu0 0.0
    %1664 = vmatprep.subr.mxu0 0.0
    %1665 = vmatpush1.msra.mxu0 0.0
    %1666 = vmatprep.subr.mxu0 0.0
    %1667 = vmatpush1.msra.mxu0 0.0
    %1668 = vmatprep.subr.mxu0 0.0
    %1669 = vmatpush1.msra.mxu0 0.0
    %1670 = vmatprep.subr.mxu0 0.0
    %1671 = vmatpush1.msra.mxu0 0.0
    %1672 = vmatprep.subr.mxu0 0.0
    %1673 = vmatpush1.msra.mxu0 0.0
    %1674 = vmatprep.subr.mxu0 0.0
    %1675 = vmatpush1.msra.mxu0 0.0
    %1676 = vmatprep.subr.mxu0 0.0
    %1677 = vmatpush1.msra.mxu0 0.0
    %1678 = vmatprep.subr.mxu0 0.0
    %1679 = vmatpush1.msra.mxu0 0.0
    %1680 = vmatprep.subr.mxu0 0.0
    %1681 = vmatpush1.msra.mxu0 0.0
    %1682 = vmatprep.subr.mxu0 0.0
    %1683 = vmatpush1.msra.mxu0 0.0
    %1684 = vmatprep.subr.mxu0 0.0
    %1685 = vmatpush1.msra.mxu0 0.0
    %1686 = vmatprep.subr.mxu0 0.0
    %1687 = vmatpush1.msra.mxu0 0.0
    %1688 = vmatprep.subr.mxu0 0.0
    %1689 = vmatpush1.msra.mxu0 0.0
    %1690 = vmatprep.subr.mxu0 0.0
    %1691 = vmatpush1.msra.mxu0 0.0
    %1692 = vmatprep.subr.mxu0 0.0
    %1693 = vmatpush1.msra.mxu0 0.0
    %1694 = vmatprep.mubr.f32.mxu0 0.0
    %1695 = vmatmul.mubr.f32.gmra.mrb[0].mxu0 %v1628
    %v1696 = vpop.f32.mrb[0].mxu0
    %v1697 = vadd.f32 %v595, %v1696
    %v1698 = vpop.f32.mrb[0].mxu0
    %1699 = vdwg.mxu0
    %v1700 = vxor.u32 %v1697, 2147483648
    %v1701 = vmul.f32 %v1700, 1.442695
    %v1702 = vpow.pop %v1701
    %v1703 = vadd.f32 %v1702, 1.0
    %v1704 = vrcp.pop %v1703
    %v1705 = vmul.f32 1.0, %v1704
    %v1706 = vmul.f32 %v1705, 2.0
    %v1707 = vsub.f32 %v1706, 1.0
    %v1708 = vmul.f32 %v1705, %v1616
    %1710 = vrot.lane.b32.xlu0 %v1707, 64
    %v1711 = vpop.permute.xlu0 %1710
    %v1713 = vmul.f32 %v1705, %v1711
    %1715 = vrot.lane.b32.xlu0 %v1713, 32
    %v1716 = vpop.permute.xlu0 %1715
    %v1718 = vadd.f32 %v1708, %v1716
    %v1719 = vtanh.pop %v1718
    %1721 = vrot.lane.b32.xlu0 %v1719, 64
    %v1722 = vpop.permute.xlu0 %1721
    %v1724 = vmul.f32 %v1705, %v1722
    %1726 = vrot.lane.b32.xlu0 %v1724, 32
    %v1727 = vpop.permute.xlu0 %1726
    %1729 = vst.msk [vmem:[#allocation2 + $0x10] sm:$0xff] %vm613, %v1727
    %v1730 = vsel %vm613, %v1727, 0
    %1732 = vmatprep.subr.mxu0 0.0
    %1733 = vmatpush1.msra.mxu0 %v604
    %1734 = vmatprep.subr.mxu0 0.0
    %1735 = vmatpush1.msra.mxu0 %v605
    %1736 = vmatprep.subr.mxu0 0.0
    %1737 = vmatpush1.msra.mxu0 %v606
    %1738 = vmatprep.subr.mxu0 0.0
    %1739 = vmatpush1.msra.mxu0 %v607
    %1740 = vmatprep.subr.mxu0 0.0
    %1741 = vmatpush1.msra.mxu0 0.0
    %1742 = vmatprep.subr.mxu0 0.0
    %1743 = vmatpush1.msra.mxu0 0.0
    %1744 = vmatprep.subr.mxu0 0.0
    %1745 = vmatpush1.msra.mxu0 0.0
    %1746 = vmatprep.subr.mxu0 0.0
    %1747 = vmatpush1.msra.mxu0 0.0
    %1748 = vmatprep.subr.mxu0 0.0
    %1749 = vmatpush1.msra.mxu0 0.0
    %1750 = vmatprep.subr.mxu0 0.0
    %1751 = vmatpush1.msra.mxu0 0.0
    %1752 = vmatprep.subr.mxu0 0.0
    %1753 = vmatpush1.msra.mxu0 0.0
    %1754 = vmatprep.subr.mxu0 0.0
    %1755 = vmatpush1.msra.mxu0 0.0
    %1756 = vmatprep.subr.mxu0 0.0
    %1757 = vmatpush1.msra.mxu0 0.0
    %1758 = vmatprep.subr.mxu0 0.0
    %1759 = vmatpush1.msra.mxu0 0.0
    %1760 = vmatprep.subr.mxu0 0.0
    %1761 = vmatpush1.msra.mxu0 0.0
    %1762 = vmatprep.subr.mxu0 0.0
    %1763 = vmatpush1.msra.mxu0 0.0
    %1764 = vmatprep.subr.mxu0 0.0
    %1765 = vmatpush1.msra.mxu0 0.0
    %1766 = vmatprep.subr.mxu0 0.0
    %1767 = vmatpush1.msra.mxu0 0.0
    %1768 = vmatprep.subr.mxu0 0.0
    %1769 = vmatpush1.msra.mxu0 0.0
    %1770 = vmatprep.subr.mxu0 0.0
    %1771 = vmatpush1.msra.mxu0 0.0
    %1772 = vmatprep.subr.mxu0 0.0
    %1773 = vmatpush1.msra.mxu0 0.0
    %1774 = vmatprep.subr.mxu0 0.0
    %1775 = vmatpush1.msra.mxu0 0.0
    %1776 = vmatprep.subr.mxu0 0.0
    %1777 = vmatpush1.msra.mxu0 0.0
    %1778 = vmatprep.subr.mxu0 0.0
    %1779 = vmatpush1.msra.mxu0 0.0
    %1780 = vmatprep.subr.mxu0 0.0
    %1781 = vmatpush1.msra.mxu0 0.0
    %1782 = vmatprep.subr.mxu0 0.0
    %1783 = vmatpush1.msra.mxu0 0.0
    %1784 = vmatprep.subr.mxu0 0.0
    %1785 = vmatpush1.msra.mxu0 0.0
    %1786 = vmatprep.subr.mxu0 0.0
    %1787 = vmatpush1.msra.mxu0 0.0
    %1788 = vmatprep.subr.mxu0 0.0
    %1789 = vmatpush1.msra.mxu0 0.0
    %1790 = vmatprep.subr.mxu0 0.0
    %1791 = vmatpush1.msra.mxu0 0.0
    %1792 = vmatprep.subr.mxu0 0.0
    %1793 = vmatpush1.msra.mxu0 0.0
    %1794 = vmatprep.subr.mxu0 0.0
    %1795 = vmatpush1.msra.mxu0 0.0
    %1796 = vmatprep.mubr.f32.mxu0 0.0
    %1797 = vmatmul.mubr.f32.gmra.mrb[0].mxu0 %v1730
    %v1798 = vpop.f32.mrb[0].mxu0
    %v1799 = vadd.f32 %v612, %v1798
    %v1800 = vpop.f32.mrb[0].mxu0
    %1801 = vdwg.mxu0
    %v1802 = vxor.u32 %v1799, 2147483648
    %v1803 = vmul.f32 %v1802, 1.442695
    %v1804 = vpow.pop %v1803
    %v1805 = vadd.f32 %v1804, 1.0
    %v1806 = vrcp.pop %v1805
    %v1807 = vmul.f32 1.0, %v1806
    %v1808 = vmul.f32 %v1807, 2.0
    %v1809 = vsub.f32 %v1808, 1.0
    %v1810 = vmul.f32 %v1807, %v1718
    %1812 = vrot.lane.b32.xlu0 %v1809, 64
    %v1813 = vpop.permute.xlu0 %1812
    %v1815 = vmul.f32 %v1807, %v1813
    %1817 = vrot.lane.b32.xlu0 %v1815, 32
    %v1818 = vpop.permute.xlu0 %1817
    %v1820 = vadd.f32 %v1810, %v1818
    %v1821 = vtanh.pop %v1820
    %1823 = vrot.lane.b32.xlu0 %v1821, 64
    %v1824 = vpop.permute.xlu0 %1823
    %v1826 = vmul.f32 %v1807, %v1824
    %1828 = vrot.lane.b32.xlu0 %v1826, 32
    %v1829 = vpop.permute.xlu0 %1828
    %1831 = vst.msk [vmem:[#allocation2 + $0x18] sm:$0xff] %vm613, %v1829
    %v1832 = vld [vmem:[#allocation2] sm:$0xff]
    %v1833 = vld [vmem:[#allocation2 + $0x8] sm:$0xff]
    %v1834 = vld [vmem:[#allocation2 + $0x10] sm:$0xff]
    %v1835 = vld [vmem:[#allocation2 + $0x18] sm:$0xff]
    %v1836 = vlaneseq
    %v1837 = vshrl.u32 %v1836, 7
    %v1838 = vsub.s32 0, %v1837
    %v1839 = vrot.slane %v67, %v1838
    %v1842 = vsel %vm613, %v1832, 0
    %v1845 = vsel %vm613, %v1833, 0
    %v1848 = vsel %vm613, %v1834, 0
    %v1851 = vsel %vm613, %v1835, 0
    %1853 = vmatprep.subr.mxu0 0.0
    %1854 = vmatpush1.msra.mxu0 %v63
    %1855 = vmatprep.subr.mxu0 0.0
    %1856 = vmatpush1.msra.mxu0 %v64
    %1857 = vmatprep.subr.mxu0 0.0
    %1858 = vmatpush1.msra.mxu0 %v65
    %1859 = vmatprep.subr.mxu0 0.0
    %1860 = vmatpush1.msra.mxu0 %v66
    %1861 = vmatprep.subr.mxu0 0.0
    %1862 = vmatpush1.msra.mxu0 0.0
    %1863 = vmatprep.subr.mxu0 0.0
    %1864 = vmatpush1.msra.mxu0 0.0
    %1865 = vmatprep.subr.mxu0 0.0
    %1866 = vmatpush1.msra.mxu0 0.0
    %1867 = vmatprep.subr.mxu0 0.0
    %1868 = vmatpush1.msra.mxu0 0.0
    %1869 = vmatprep.subr.mxu0 0.0
    %1870 = vmatpush1.msra.mxu0 0.0
    %1871 = vmatprep.subr.mxu0 0.0
    %1872 = vmatpush1.msra.mxu0 0.0
    %1873 = vmatprep.subr.mxu0 0.0
    %1874 = vmatpush1.msra.mxu0 0.0
    %1875 = vmatprep.subr.mxu0 0.0
    %1876 = vmatpush1.msra.mxu0 0.0
    %1877 = vmatprep.subr.mxu0 0.0
    %1878 = vmatpush1.msra.mxu0 0.0
    %1879 = vmatprep.subr.mxu0 0.0
    %1880 = vmatpush1.msra.mxu0 0.0
    %1881 = vmatprep.subr.mxu0 0.0
    %1882 = vmatpush1.msra.mxu0 0.0
    %1883 = vmatprep.subr.mxu0 0.0
    %1884 = vmatpush1.msra.mxu0 0.0
    %1885 = vmatprep.subr.mxu0 0.0
    %1886 = vmatpush1.msra.mxu0 0.0
    %1887 = vmatprep.subr.mxu0 0.0
    %1888 = vmatpush1.msra.mxu0 0.0
    %1889 = vmatprep.subr.mxu0 0.0
    %1890 = vmatpush1.msra.mxu0 0.0
    %1891 = vmatprep.subr.mxu0 0.0
    %1892 = vmatpush1.msra.mxu0 0.0
    %1893 = vmatprep.subr.mxu0 0.0
    %1894 = vmatpush1.msra.mxu0 0.0
    %1895 = vmatprep.subr.mxu0 0.0
    %1896 = vmatpush1.msra.mxu0 0.0
    %1897 = vmatprep.subr.mxu0 0.0
    %1898 = vmatpush1.msra.mxu0 0.0
    %1899 = vmatprep.subr.mxu0 0.0
    %1900 = vmatpush1.msra.mxu0 0.0
    %1901 = vmatprep.subr.mxu0 0.0
    %1902 = vmatpush1.msra.mxu0 0.0
    %1903 = vmatprep.subr.mxu0 0.0
    %1904 = vmatpush1.msra.mxu0 0.0
    %1905 = vmatprep.subr.mxu0 0.0
    %1906 = vmatpush1.msra.mxu0 0.0
    %1907 = vmatprep.subr.mxu0 0.0
    %1908 = vmatpush1.msra.mxu0 0.0
    %1909 = vmatprep.subr.mxu0 0.0
    %1910 = vmatpush1.msra.mxu0 0.0
    %1911 = vmatprep.subr.mxu0 0.0
    %1912 = vmatpush1.msra.mxu0 0.0
    %1913 = vmatprep.subr.mxu0 0.0
    %1914 = vmatpush1.msra.mxu0 0.0
    %1915 = vmatprep.subr.mxu0 0.0
    %1916 = vmatpush1.msra.mxu0 0.0
    %1917 = vmatprep.mubr.f32.mxu0 0.0
    %1918 = vmatmul.mubr.f32.gmra.mrb[0].mxu0 %v1842
    %v1919 = vpop.f32.mrb[0].mxu0
    %v1920 = vadd.f32 %v1839, %v1919
    %v1921 = vpop.f32.mrb[0].mxu0
    %1922 = vmatprep.mubr.f32.mxu0 0.0
    %1923 = vmatmul.mubr.f32.gmra.mrb[0].mxu0 %v1845
    %v1924 = vpop.f32.mrb[0].mxu0
    %v1925 = vadd.f32 %v1839, %v1924
    %v1926 = vpop.f32.mrb[0].mxu0
    %1927 = vmatprep.mubr.f32.mxu0 0.0
    %1928 = vmatmul.mubr.f32.gmra.mrb[0].mxu0 %v1848
    %v1929 = vpop.f32.mrb[0].mxu0
    %v1930 = vadd.f32 %v1839, %v1929
    %v1931 = vpop.f32.mrb[0].mxu0
    %1932 = vmatprep.mubr.f32.mxu0 0.0
    %1933 = vmatmul.mubr.f32.gmra.mrb[0].mxu0 %v1851
    %v1934 = vpop.f32.mrb[0].mxu0
    %v1935 = vadd.f32 %v1839, %v1934
    %v1936 = vpop.f32.mrb[0].mxu0
    %1937 = vdwg.mxu0
    %1938 = vst.msk [vmem:[%s11] sm:$0xff] %vm82, %v1920
    %1939 = vst.msk [vmem:[%s11 + $0x8] sm:$0xff] %vm82, %v1925
    %1940 = vst.msk [vmem:[%s11 + $0x10] sm:$0xff] %vm82, %v1930
    %1941 = vst.msk [vmem:[%s11 + $0x18] sm:$0xff] %vm82, %v1935
    // Predicated region
    $region50: #{tpu_custom_call.1} parent=1 // pred_check
      _
    $region51: #{tpu_custom_call.1} parent=1 // pred_check_branch
      %1943 = sbr.rel (0) target = $region53
    $region52: #{tpu_custom_call.1} parent=1 // pred_region
      _
    $region53: #{tpu_custom_call.1} parent=1 // pred_fallthru
      _
    // Predicated region
    $region54: #{tpu_custom_call.1} parent=1 // pred_check
      _
    $region55: #{tpu_custom_call.1} parent=1 // pred_check_branch
      %1945 = sbr.rel (0) target = $region57
    $region56: #{tpu_custom_call.1} parent=1 // pred_region
      _
    $region57: #{tpu_custom_call.1} parent=1 // pred_fallthru
      _
    %1946 = vsyncpa [#allocation4], 1

</llo_original>
